<compile_context>
chip_gen: v6e
topology: v6e:2x2x1
jax: 0.10.0
libtpu: 0.0.40
codegen_flags: <defaults>
</compile_context>

<pallas_src>
import functools

import jax
import jax.numpy as jnp
from jax.experimental import pallas as pl
from jax.experimental.pallas import tpu as pltpu

LN_EPS = 1e-5  # nn.LayerNorm default


def _round_up(n, m):
    return ((n + m - 1) // m) * m


@functools.lru_cache(maxsize=1)
def _buffered_single_supported():
    """Probe (once, cached) whether pipeline_mode=pl.Buffered(1) lowers on this build."""
    try:
        def k(x_ref, c_ref, o_ref):
            o_ref[...] = x_ref[...] + c_ref[...]

        f = pl.pallas_call(
            k,
            out_shape=jax.ShapeDtypeStruct((16, 128), jnp.float32),
            grid_spec=pltpu.PrefetchScalarGridSpec(
                num_scalar_prefetch=0,
                grid=(2,),
                in_specs=[
                    pl.BlockSpec((8, 128), lambda i: (i, 0)),
                    pl.BlockSpec((8, 128), lambda i: (0, 0),
                                 pipeline_mode=pl.Buffered(1)),
                ],
                out_specs=pl.BlockSpec((8, 128), lambda i: (i, 0)),
            ),
        )
        jax.jit(f).lower(
            jax.ShapeDtypeStruct((16, 128), jnp.float32),
            jax.ShapeDtypeStruct((8, 128), jnp.float32),
        ).compile()
        return True
    except Exception:  # probe only; the real kernel never silently falls back
        return False


def _choose_tm(M, D, act_itemsize):
    """Row tile: target ~1 MiB streamed x tile, multiple of 8, bounded pad waste."""
    target_bytes = 1 << 20
    tm = max(8, min(1024, target_bytes // max(1, D * act_itemsize)))
    tm = _round_up(tm, 8)
    tm = min(tm, _round_up(M, 8))
    best_tm, best_waste = tm, 1.0
    cand = tm
    while True:
        m_pad = _round_up(M, cand)
        waste = (m_pad - M) / m_pad
        if waste <= 0.125:          # <= 12.5% zero-padded rows: good enough
            return cand
        if waste < best_waste:
            best_tm, best_waste = cand, waste
        if cand <= 8:
            return best_tm
        cand = max(8, _round_up(cand // 2, 8))


def _vmem_limit_bytes(tm, D, act_itemsize, single_buffer_consts):
    w_bufs = 1 if single_buffer_consts else 2
    c_bufs = 1 if single_buffer_consts else 2
    need = (2 * tm * D * act_itemsize      # x tile (double-buffered)
            + 2 * tm * D * act_itemsize    # out tile (double-buffered)
            + w_bufs * D * D * 2           # resident bf16 weight
            + c_bufs * 3 * D * 4)          # bias / gamma / beta (f32)
    try:
        cap = int(pltpu.get_tpu_info().vmem_capacity_bytes)
    except Exception:
        cap = 64 * 1024 * 1024             # conservative (v7x per-core physical)
    cap = int(0.85 * cap)                  # leave compiler-scratch headroom
    return int(min(max(2 * need, 32 * 1024 * 1024), cap))


def _residual_kernel(x_ref, wio_ref, b_ref, gamma_ref, beta_ref, o_ref):
    # x_ref: (tm, D)             wio_ref: (D, D) bf16, (in, out) layout
    # b/gamma/beta: (1, D) f32   o_ref: (tm, D) in x.dtype
    x = x_ref[...]
    x_f32 = x.astype(jnp.float32)

    # sublayer(x) = x @ W_io + b: canonical MXU contraction (weight stays
    # stationary in its stored layout), bf16 operands, f32 accumulation.
    s = jnp.dot(x.astype(jnp.bfloat16), wio_ref[...],
                preferred_element_type=jnp.float32) + b_ref[...]

    # dropout (inference) -> identity; residual add in f32.
    r = x_f32 + s

    # LayerNorm over the last dim (biased variance, eps inside sqrt — torch).
    # Two-pass mean/var kept for numerical stability; reductions use the XLU,
    # rsqrt the EUP (separate VLIW slots from the VPU work).
    mean = jnp.mean(r, axis=-1, keepdims=True)
    centered = r - mean
    var = jnp.mean(centered * centered, axis=-1, keepdims=True)
    y = centered * jax.lax.rsqrt(var + LN_EPS)
    o_ref[...] = (y * gamma_ref[...] + beta_ref[...]).astype(o_ref.dtype)


@functools.partial(jax.jit, static_argnames=("tm", "single_buffer_consts"))
def _residual_impl(x, w_io, b, gamma, beta, *, tm, single_buffer_consts):
    M, D = x.shape
    M_pad = _round_up(M, tm)
    # Zero rows are LayerNorm-safe (var=0 -> rsqrt(eps)); sliced off at the end.
    x_p = jnp.pad(x, ((0, M_pad - M), (0, 0))) if M_pad != M else x

    w_bf16 = w_io.astype(jnp.bfloat16)          # no-op if already bf16 (preferred)
    b2 = b.reshape(1, D).astype(jnp.float32)
    g2 = gamma.reshape(1, D).astype(jnp.float32)
    be2 = beta.reshape(1, D).astype(jnp.float32)

    def const_spec(shape):
        if single_buffer_consts:
            # Constant index_map -> one resident buffer; halves the weight's
            # VMEM footprint vs. the default double buffering.
            return pl.BlockSpec(shape, lambda i: (0, 0),
                                pipeline_mode=pl.Buffered(1))
        return pl.BlockSpec(shape, lambda i: (0, 0))

    act_itemsize = jnp.dtype(x.dtype).itemsize
    vmem_limit = _vmem_limit_bytes(tm, D, act_itemsize, single_buffer_consts)

    out = pl.pallas_call(
        _residual_kernel,
        out_shape=jax.ShapeDtypeStruct((M_pad, D), x.dtype),
        grid_spec=pltpu.PrefetchScalarGridSpec(
            num_scalar_prefetch=0,
            grid=(M_pad // tm,),
            in_specs=[
                pl.BlockSpec((tm, D), lambda i: (i, 0)),   # x tile (streamed)
                const_spec((D, D)),                        # weight (resident)
                const_spec((1, D)),                        # bias
                const_spec((1, D)),                        # ln gamma
                const_spec((1, D)),                        # ln beta
            ],
            out_specs=pl.BlockSpec((tm, D), lambda i: (i, 0)),
        ),
        compiler_params=pltpu.CompilerParams(
            dimension_semantics=("parallel",),   # row tiles are independent
            vmem_limit_bytes=vmem_limit,
        ),
    )(x_p, w_bf16, b2, g2, be2)
    return out[:M]


def residual_forward(x, w_io, b, gamma, beta, *, tm=None):
    """Fused Linear + residual + LayerNorm.

    x:    (M, D) activations (f32 or bf16 — streamed in their own dtype,
          residual/LN math is done in f32 in-kernel, output in x.dtype).
    w_io: (D, D) linear weight in (in, out) layout, i.e. the PyTorch weight
          transposed ONCE at init (bf16 preferred).
    b, gamma, beta: (D,).
    Perf note: D should be a multiple of 128 (lane-dense output stores).
    """
    M, D = x.shape
    if tm is None:
        tm = _choose_tm(M, D, jnp.dtype(x.dtype).itemsize)
    else:
        tm = min(_round_up(tm, 8), _round_up(M, 8))
    return _residual_impl(x, w_io, b, gamma, beta, tm=int(tm),
                          single_buffer_consts=_buffered_single_supported())


def residual_reference(x, w, b, gamma, beta):
    # w in PyTorch (out, in) layout; all-f32 reference.
    s = x @ w.T + b
    r = x + s
    mean = jnp.mean(r, axis=-1, keepdims=True)
    var = jnp.mean((r - mean) ** 2, axis=-1, keepdims=True)
    y = (r - mean) / jnp.sqrt(var + LN_EPS)
    return y * gamma + beta


if __name__ == "__main__":
    # D lane-dense (multiple of 128).  M = 8192 tokens with tm=512 -> grid=(16,):
    # >= 8 pipelined steps per TensorCore even when v7x shards the "parallel"
    # axis across its two cores (resident-weight DMA and per-step overhead are
    # amortized; BlockSpec double-buffering actually overlaps DMA with compute).
    batch, seq, dim = 8, 1024, 128

    key = jax.random.PRNGKey(0)
    kx, kw, kb = jax.random.split(key, 3)

    x = jax.random.normal(kx, (batch, seq, dim), dtype=jnp.float32)

    # nn.Linear(dim, dim) + nn.LayerNorm(dim) parameters.
    bound = 1.0 / (dim ** 0.5)
    w = jax.random.uniform(kw, (dim, dim), jnp.float32, -bound, bound)   # (out, in)
    b = jax.random.uniform(kb, (dim,), jnp.float32, -bound, bound)
    gamma = jnp.ones((dim,), jnp.float32)
    beta = jnp.zeros((dim,), jnp.float32)

    # One-time init-side prep: transpose to (in, out) + bf16 cast so the kernel
    # never transposes / re-casts the resident weight per grid step.
    w_io = jnp.asarray(w.T, dtype=jnp.bfloat16)

    x2d = x.reshape(batch * seq, dim)                        # [tokens, dim]
    out = residual_forward(x2d, w_io, b, gamma, beta, tm=512)
    out = jax.block_until_ready(out)

    ref = residual_reference(x2d, w, b, gamma, beta)
    assert out.shape == (batch * seq, dim)
    # bf16 MXU operands -> loosened tolerance vs. the all-f32 reference.
    assert jnp.allclose(out, ref, atol=5e-2, rtol=5e-2), "mismatch vs reference"

    out3d = out.reshape(batch, seq, dim)                     # back to (batch, seq, dim)
    assert out3d.shape == (batch, seq, dim)
    print("KERNEL_OK")
</pallas_src>

<mosaic_0001>
module attributes {stable_mosaic.version = 11 : i64} {
  func.func @_residual_kernel(%arg0: i32, %arg1: memref<512x128xf32, #tpu.memory_space<vmem>>, %arg2: memref<128x128xbf16, #tpu.memory_space<vmem>>, %arg3: memref<1x128xf32, #tpu.memory_space<vmem>>, %arg4: memref<1x128xf32, #tpu.memory_space<vmem>>, %arg5: memref<1x128xf32, #tpu.memory_space<vmem>>, %arg6: memref<512x128xf32, #tpu.memory_space<vmem>>) attributes {dimension_semantics = [#tpu.dimension_semantics<parallel>], iteration_bounds = array<i64: 16>, scalar_prefetch = 0 : i64, scratch_operands = 0 : i64, tpu.core_type = #tpu.core_type<tc>, window_params = [{transform_indices = @transform_0, window_bounds = array<i64: 512, 128>}, {pipeline_mode = #tpu.pipeline_mode<synchronous>, transform_indices = @transform_1, window_bounds = array<i64: 128, 128>}, {pipeline_mode = #tpu.pipeline_mode<synchronous>, transform_indices = @transform_2, window_bounds = array<i64: 1, 128>}, {pipeline_mode = #tpu.pipeline_mode<synchronous>, transform_indices = @transform_3, window_bounds = array<i64: 1, 128>}, {pipeline_mode = #tpu.pipeline_mode<synchronous>, transform_indices = @transform_4, window_bounds = array<i64: 1, 128>}, {transform_indices = @transform_5, window_bounds = array<i64: 512, 128>}]} {
    %c0 = arith.constant 0 : index
    %c0_0 = arith.constant 0 : index
    %0 = vector.load %arg1[%c0, %c0_0] : memref<512x128xf32, #tpu.memory_space<vmem>>, vector<512x128xf32>
    %1 = arith.truncf %0 : vector<512x128xf32> to vector<512x128xbf16>
    %c0_1 = arith.constant 0 : index
    %c0_2 = arith.constant 0 : index
    %2 = vector.load %arg2[%c0_1, %c0_2] : memref<128x128xbf16, #tpu.memory_space<vmem>>, vector<128x128xbf16>
    %cst = arith.constant dense<0.000000e+00> : vector<512x128xf32>
    %3 = tpu.matmul %1, %2, %cst {dimension_numbers = #tpu.dot_dimension_numbers<[1], [0], [0], [1], [0, 0, 1, 1], [], []>} : vector<512x128xbf16>, vector<128x128xbf16>, vector<512x128xf32> -> vector<512x128xf32>
    %c0_3 = arith.constant 0 : index
    %c0_4 = arith.constant 0 : index
    %4 = vector.load %arg3[%c0_3, %c0_4] : memref<1x128xf32, #tpu.memory_space<vmem>>, vector<1x128xf32>
    %5 = vector.broadcast %4 : vector<1x128xf32> to vector<512x128xf32>
    %6 = arith.addf %3, %5 : vector<512x128xf32>
    %7 = arith.addf %0, %6 : vector<512x128xf32>
    %cst_5 = arith.constant dense<0.000000e+00> : vector<512xf32>
    %8 = vector.multi_reduction <add>, %7, %cst_5 [1] : vector<512x128xf32> to vector<512xf32>
    %9 = vector.shape_cast %8 : vector<512xf32> to vector<512x1xf32>
    %cst_6 = arith.constant 1.280000e+02 : f32
    %10 = vector.broadcast %cst_6 : f32 to vector<512x1xf32>
    %11 = arith.divf %9, %10 : vector<512x1xf32>
    %12 = vector.broadcast %11 : vector<512x1xf32> to vector<512x128xf32>
    %13 = arith.subf %7, %12 : vector<512x128xf32>
    %14 = arith.mulf %13, %13 : vector<512x128xf32>
    %cst_7 = arith.constant dense<0.000000e+00> : vector<512xf32>
    %15 = vector.multi_reduction <add>, %14, %cst_7 [1] : vector<512x128xf32> to vector<512xf32>
    %16 = vector.shape_cast %15 : vector<512xf32> to vector<512x1xf32>
    %cst_8 = arith.constant 1.280000e+02 : f32
    %17 = vector.broadcast %cst_8 : f32 to vector<512x1xf32>
    %18 = arith.divf %16, %17 : vector<512x1xf32>
    %cst_9 = arith.constant 9.99999974E-6 : f32
    %19 = vector.broadcast %cst_9 : f32 to vector<512x1xf32>
    %20 = arith.addf %18, %19 : vector<512x1xf32>
    %21 = math.rsqrt %20 : vector<512x1xf32>
    %22 = vector.broadcast %21 : vector<512x1xf32> to vector<512x128xf32>
    %23 = arith.mulf %13, %22 : vector<512x128xf32>
    %c0_10 = arith.constant 0 : index
    %c0_11 = arith.constant 0 : index
    %24 = vector.load %arg4[%c0_10, %c0_11] : memref<1x128xf32, #tpu.memory_space<vmem>>, vector<1x128xf32>
    %25 = vector.broadcast %24 : vector<1x128xf32> to vector<512x128xf32>
    %26 = arith.mulf %23, %25 : vector<512x128xf32>
    %c0_12 = arith.constant 0 : index
    %c0_13 = arith.constant 0 : index
    %27 = vector.load %arg5[%c0_12, %c0_13] : memref<1x128xf32, #tpu.memory_space<vmem>>, vector<1x128xf32>
    %28 = vector.broadcast %27 : vector<1x128xf32> to vector<512x128xf32>
    %29 = arith.addf %26, %28 : vector<512x128xf32>
    %c0_14 = arith.constant 0 : index
    %c0_15 = arith.constant 0 : index
    %30 = vector.load %arg6[%c0_14, %c0_15] : memref<512x128xf32, #tpu.memory_space<vmem>>, vector<512x128xf32>
    tpu.vector_store %arg6[%c0_14, %c0_15], %29 {strides = array<i32>} : memref<512x128xf32, #tpu.memory_space<vmem>>, vector<512x128xf32>,
    return
  }
  func.func @transform_0(%arg0: i32) -> (i32, i32) {
    %c0_i32 = arith.constant 0 : i32
    %c0_i32_0 = arith.constant 0 : i32
    return %arg0, %c0_i32 : i32, i32
  }
  func.func @transform_1(%arg0: i32) -> (i32, i32) {
    %c0_i32 = arith.constant 0 : i32
    %c0_i32_0 = arith.constant 0 : i32
    %c0_i32_1 = arith.constant 0 : i32
    return %c0_i32, %c0_i32_0 : i32, i32
  }
  func.func @transform_2(%arg0: i32) -> (i32, i32) {
    %c0_i32 = arith.constant 0 : i32
    %c0_i32_0 = arith.constant 0 : i32
    %c0_i32_1 = arith.constant 0 : i32
    return %c0_i32, %c0_i32_0 : i32, i32
  }
  func.func @transform_3(%arg0: i32) -> (i32, i32) {
    %c0_i32 = arith.constant 0 : i32
    %c0_i32_0 = arith.constant 0 : i32
    %c0_i32_1 = arith.constant 0 : i32
    return %c0_i32, %c0_i32_0 : i32, i32
  }
  func.func @transform_4(%arg0: i32) -> (i32, i32) {
    %c0_i32 = arith.constant 0 : i32
    %c0_i32_0 = arith.constant 0 : i32
    %c0_i32_1 = arith.constant 0 : i32
    return %c0_i32, %c0_i32_0 : i32, i32
  }
  func.func @transform_5(%arg0: i32) -> (i32, i32) {
    %c0_i32 = arith.constant 0 : i32
    %c0_i32_0 = arith.constant 0 : i32
    return %arg0, %c0_i32 : i32, i32
  }
}

</mosaic_0001>

<llo_original>
// kernel: _residual_impl.1
$region0: #{_residual_impl.1}
  #allocation0 [shape = 'u32[]', space=smem, size = 0x4, offset = 0x4, fixed_abs, tag = 'smem constant byte address 0x4 - core index']
  #allocation1 [shape = 'u32[144,128]{1,0:T(1,128)}', space=vmem, size = 0x12000, scoped, tag = 'internal scratch']
  %s0 = inlined_call_operand.hbm [shape: f32[8192,128], index: 0, kind: input, shape index: {}]
  %s1 = inlined_call_operand.hbm [shape: bf16[128,128], index: 1, kind: input, shape index: {}]
  %s2 = inlined_call_operand.hbm [shape: f32[1,128], index: 2, kind: input, shape index: {}]
  %s3 = inlined_call_operand.hbm [shape: f32[1,128], index: 3, kind: input, shape index: {}]
  %s4 = inlined_call_operand.hbm [shape: f32[1,128], index: 4, kind: input, shape index: {}]
  %s5 = inlined_call_operand.hbm [shape: f32[8192,128], index: 5, kind: output, shape index: {}]
  %s6 = sld [smem:[#allocation0]]
  $region73: #{_residual_impl.1} parent=0
    _
  %s8 = ssub.s32 1, %s6
  %s9 = scalar_select 0, %s8, %s6
  $region1: #{_residual_impl.1} parent=0
    #allocation2 [shape = 'u8[524288]{0}', space=vmem, size = 0x80000, scoped, tag = 'input window, operand 0']
    #allocation3 [shape = 's32[2]{0}', space=sflag, size = 0x8, scoped, tag = 'scoped memory for _residual_impl.1']
    #allocation4 [shape = 's32[2]{0}', space=sflag, size = 0x8, scoped, tag = 'scoped memory for _residual_impl.1']
    #allocation5 [shape = 'u8[32768]{0}', space=vmem, size = 0x8000, scoped, tag = 'input window, operand 1, single buffered']
    #allocation6 [shape = 's32[1]{0}', space=sflag, size = 0x4, scoped, tag = 'scoped memory for _residual_impl.1']
    #allocation7 [shape = 'u8[512]{0}', space=vmem, size = 0x400, scoped, tag = 'input window, operand 2, single buffered']
    #allocation8 [shape = 'u8[512]{0}', space=vmem, size = 0x400, scoped, tag = 'input window, operand 3, single buffered']
    #allocation9 [shape = 's32[1]{0}', space=sflag, size = 0x4, scoped, tag = 'scoped memory for _residual_impl.1']
    #allocation10 [shape = 'u8[512]{0}', space=vmem, size = 0x400, scoped, tag = 'input window, operand 4, single buffered']
    #allocation11 [shape = 'u8[524288]{0}', space=vmem, size = 0x80000, scoped, tag = 'output window, operand 0']
    %10 = vsyncpa [#allocation3], 0
    %s11 = scalar_lea.sflag [#allocation3], 1
    %12 = vsyncpa %s11, 0
    %13 = vsyncpa [#allocation6], 0
    %14 = vsyncpa [#allocation9], 0
    %15 = vsyncpa [#allocation4], 0
    %s16 = scalar_lea.sflag [#allocation4], 1
    %17 = vsyncpa %s16, 0
    loop: start=0, step=1, limit=18
    $region2: #{_residual_impl.1} parent=1 // loop_pre_header
      _
    $region3: #{_residual_impl.1} parent=1 // loop_header
      %s19 = sphi 0, %s23
      %p20 = scmp.ge.s32.totalorder %s19, 18
      %s29 = sphi 0, %s31
      %s32 = sphi 0, %s29
      %s33 = sphi 0, %s32
      %s49 = sphi 0, %s33
      %s53 = sphi 0, %s53
      %s55 = sphi 0, %s53
      %s56 = sphi 0, %s55
      %s70 = sphi 0, %s56
      %s74 = sphi 0, %s74
      %s76 = sphi 0, %s74
      %s77 = sphi 0, %s76
      %s91 = sphi 0, %s77
      %s95 = sphi 0, %s95
      %s97 = sphi 0, %s95
      %s98 = sphi 0, %s97
      %s112 = sphi 0, %s98
      %s116 = sphi 0, %s116
      %s118 = sphi 0, %s116
      %s119 = sphi 0, %s118
      %s133 = sphi 0, %s119
      %s139 = sphi 0, %s141
      %s142 = sphi 0, %s139
      %s143 = sphi 0, %s142
      %s159 = sphi 0, %s143
    $region4: #{_residual_impl.1} parent=1 // loop_header_branch
      %22 = sbr.rel (%p20) target = $region8
    $region5: #{_residual_impl.1} parent=1 // loop_body
      %s24 = ssub.s32 %s19, 1
      %s25 = ssub.s32 %s19, 2
      %s26 = sadd.s32 %s19, 1
      %s27 = ssub.s32 %s19, %s26
      %p28 = scmp.eq.s32.totalorder %s27, 0
      %s30 = sadd.s32 %s29, 1
      %s31 = scalar_select %p28, %s29, %s30
      %p34 = pneg %p28
      %p35 = scmp.eq.s32.totalorder %s19, 15
      %p36 = por %p34, %p35
      %p37 = scmp.ne.s32.totalorder %s29, %s32
      %p38 = scmp.eq.s32.totalorder %s19, 0
      %p39 = por %p37, %p38
      %p40 = scmp.ne.s32.totalorder %s29, %s32
      %p41 = scmp.eq.s32.totalorder %s24, 15
      %p42 = por %p40, %p41
      %p43 = scmp.ne.s32.totalorder %s32, %s33
      %p44 = scmp.eq.s32.totalorder %s24, 0
      %p45 = por %p43, %p44
      %p46 = scmp.ne.s32.totalorder %s32, %s33
      %p47 = scmp.eq.s32.totalorder %s25, 15
      %p48 = por %p46, %p47
      %p50 = scmp.ne.s32.totalorder %s33, %s49
      %p51 = scmp.eq.s32.totalorder %s25, 0
      %p52 = por %p50, %p51
      %s54 = sadd.s32 %s53, 1
      %p57 = scmp.eq.s32.totalorder %s19, 15
      %p58 = scmp.ne.s32.totalorder %s53, %s55
      %p59 = scmp.eq.s32.totalorder %s19, 0
      %p60 = por %p58, %p59
      %p61 = scmp.ne.s32.totalorder %s53, %s55
      %p62 = scmp.eq.s32.totalorder %s24, 15
      %p63 = por %p61, %p62
      %p64 = scmp.ne.s32.totalorder %s55, %s56
      %p65 = scmp.eq.s32.totalorder %s24, 0
      %p66 = por %p64, %p65
      %p67 = scmp.ne.s32.totalorder %s55, %s56
      %p68 = scmp.eq.s32.totalorder %s25, 15
      %p69 = por %p67, %p68
      %p71 = scmp.ne.s32.totalorder %s56, %s70
      %p72 = scmp.eq.s32.totalorder %s25, 0
      %p73 = por %p71, %p72
      %s75 = sadd.s32 %s74, 1
      %p78 = scmp.eq.s32.totalorder %s19, 15
      %p79 = scmp.ne.s32.totalorder %s74, %s76
      %p80 = scmp.eq.s32.totalorder %s19, 0
      %p81 = por %p79, %p80
      %p82 = scmp.ne.s32.totalorder %s74, %s76
      %p83 = scmp.eq.s32.totalorder %s24, 15
      %p84 = por %p82, %p83
      %p85 = scmp.ne.s32.totalorder %s76, %s77
      %p86 = scmp.eq.s32.totalorder %s24, 0
      %p87 = por %p85, %p86
      %p88 = scmp.ne.s32.totalorder %s76, %s77
      %p89 = scmp.eq.s32.totalorder %s25, 15
      %p90 = por %p88, %p89
      %p92 = scmp.ne.s32.totalorder %s77, %s91
      %p93 = scmp.eq.s32.totalorder %s25, 0
      %p94 = por %p92, %p93
      %s96 = sadd.s32 %s95, 1
      %p99 = scmp.eq.s32.totalorder %s19, 15
      %p100 = scmp.ne.s32.totalorder %s95, %s97
      %p101 = scmp.eq.s32.totalorder %s19, 0
      %p102 = por %p100, %p101
      %p103 = scmp.ne.s32.totalorder %s95, %s97
      %p104 = scmp.eq.s32.totalorder %s24, 15
      %p105 = por %p103, %p104
      %p106 = scmp.ne.s32.totalorder %s97, %s98
      %p107 = scmp.eq.s32.totalorder %s24, 0
      %p108 = por %p106, %p107
      %p109 = scmp.ne.s32.totalorder %s97, %s98
      %p110 = scmp.eq.s32.totalorder %s25, 15
      %p111 = por %p109, %p110
      %p113 = scmp.ne.s32.totalorder %s98, %s112
      %p114 = scmp.eq.s32.totalorder %s25, 0
      %p115 = por %p113, %p114
      %s117 = sadd.s32 %s116, 1
      %p120 = scmp.eq.s32.totalorder %s19, 15
      %p121 = scmp.ne.s32.totalorder %s116, %s118
      %p122 = scmp.eq.s32.totalorder %s19, 0
      %p123 = por %p121, %p122
      %p124 = scmp.ne.s32.totalorder %s116, %s118
      %p125 = scmp.eq.s32.totalorder %s24, 15
      %p126 = por %p124, %p125
      %p127 = scmp.ne.s32.totalorder %s118, %s119
      %p128 = scmp.eq.s32.totalorder %s24, 0
      %p129 = por %p127, %p128
      %p130 = scmp.ne.s32.totalorder %s118, %s119
      %p131 = scmp.eq.s32.totalorder %s25, 15
      %p132 = por %p130, %p131
      %p134 = scmp.ne.s32.totalorder %s119, %s133
      %p135 = scmp.eq.s32.totalorder %s25, 0
      %p136 = por %p134, %p135
      %s137 = ssub.s32 %s19, %s26
      %p138 = scmp.eq.s32.totalorder %s137, 0
      %s140 = sadd.s32 %s139, 1
      %s141 = scalar_select %p138, %s139, %s140
      %p144 = pneg %p138
      %p145 = scmp.eq.s32.totalorder %s19, 15
      %p146 = por %p144, %p145
      %p147 = scmp.ne.s32.totalorder %s139, %s142
      %p148 = scmp.eq.s32.totalorder %s19, 0
      %p149 = por %p147, %p148
      %p150 = scmp.ne.s32.totalorder %s139, %s142
      %p151 = scmp.eq.s32.totalorder %s24, 15
      %p152 = por %p150, %p151
      %p153 = scmp.ne.s32.totalorder %s142, %s143
      %p154 = scmp.eq.s32.totalorder %s24, 0
      %p155 = por %p153, %p154
      %p156 = scmp.ne.s32.totalorder %s142, %s143
      %p157 = scmp.eq.s32.totalorder %s25, 15
      %p158 = por %p156, %p157
      %p160 = scmp.ne.s32.totalorder %s143, %s159
      %p161 = scmp.eq.s32.totalorder %s25, 0
      %p162 = por %p160, %p161
      %p163 = scmp.le.s32.totalorder 1, %s19
      %p164 = scmp.lt.s32.totalorder %s19, 17
      %p165 = pnand %p163, %p164
      %p166 = pneg %p165
      // Predicated region
      $region9: #{_residual_impl.1} parent=5 // pred_check
        _
      $region10: #{_residual_impl.1} parent=5 // pred_check_branch
        %168 = sbr.rel (%p165) target = $region12
      $region11: #{_residual_impl.1} parent=5 // pred_region
        %s169 = ssub.s32 %s19, 1
        // Predicated region
        $region13: #{_residual_impl.1} parent=11 // pred_check
          %p170 = pneg %p66
        $region14: #{_residual_impl.1} parent=11 // pred_check_branch
          %172 = sbr.rel (%p170) target = $region16
        $region15: #{_residual_impl.1} parent=11 // pred_region
          %s174 = ssub.s32 1024, 1024
          %175 = vsyncadd [#allocation6], %s174
          %s176 = sshll.u32 [#allocation5], 4
          %s177 = int_to_ptr.vmem [resolvable:$true] %s176
          %182 = dma.hbm_to_vmem [thread:$0]  %s1, 1024, %s177, [#allocation6], 64, 64, 4
        $region16: #{_residual_impl.1} parent=11 // pred_fallthru
          _
        // Predicated region
        $region17: #{_residual_impl.1} parent=11 // pred_check
          %p183 = pneg %p87
        $region18: #{_residual_impl.1} parent=11 // pred_check_branch
          %185 = sbr.rel (%p183) target = $region20
        $region19: #{_residual_impl.1} parent=11 // pred_region
          %s187 = ssub.s32 16, 16
          %188 = vsyncadd [#allocation6], %s187
          %s190 = sshll.u32 [#allocation7], 4
          %s191 = int_to_ptr.vmem [resolvable:$true] %s190
          %193 = dma.hbm_to_vmem [thread:$0]  %s2, 16, %s191, [#allocation6]
        $region20: #{_residual_impl.1} parent=11 // pred_fallthru
          _
        // Predicated region
        $region21: #{_residual_impl.1} parent=11 // pred_check
          %p194 = pneg %p108
        $region22: #{_residual_impl.1} parent=11 // pred_check_branch
          %196 = sbr.rel (%p194) target = $region24
        $region23: #{_residual_impl.1} parent=11 // pred_region
          %s198 = ssub.s32 16, 16
          %199 = vsyncadd [#allocation9], %s198
          %s201 = sshll.u32 [#allocation8], 4
          %s202 = int_to_ptr.vmem [resolvable:$true] %s201
          %204 = dma.hbm_to_vmem [thread:$0]  %s3, 16, %s202, [#allocation9]
        $region24: #{_residual_impl.1} parent=11 // pred_fallthru
          _
        // Predicated region
        $region25: #{_residual_impl.1} parent=11 // pred_check
          %p205 = pneg %p129
        $region26: #{_residual_impl.1} parent=11 // pred_check_branch
          %207 = sbr.rel (%p205) target = $region28
        $region27: #{_residual_impl.1} parent=11 // pred_region
          %s209 = ssub.s32 16, 16
          %210 = vsyncadd [#allocation9], %s209
          %s212 = sshll.u32 [#allocation10], 4
          %s213 = int_to_ptr.vmem [resolvable:$true] %s212
          %215 = dma.hbm_to_vmem [thread:$0]  %s4, 16, %s213, [#allocation9]
        $region28: #{_residual_impl.1} parent=11 // pred_fallthru
          _
      $region12: #{_residual_impl.1} parent=5 // pred_fallthru
        _
      %p216 = scmp.lt.s32.totalorder %s19, 16
      // Predicated region
      $region29: #{_residual_impl.1} parent=5 // pred_check
        %p217 = pneg %p216
      $region30: #{_residual_impl.1} parent=5 // pred_check_branch
        %219 = sbr.rel (%p217) target = $region32
      $region31: #{_residual_impl.1} parent=5 // pred_region
        // Predicated region
        $region33: #{_residual_impl.1} parent=31 // pred_check
          %p220 = pneg %p39
        $region34: #{_residual_impl.1} parent=31 // pred_check_branch
          %222 = sbr.rel (%p220) target = $region36
        $region35: #{_residual_impl.1} parent=31 // pred_region
          %s223 = sand.u32 %s29, 1
          %s224 = scalar_lea.sflag [#allocation3], %s223
          %s225 = sand.u32 %s29, 1
          %s226 = smul.addr %s225, 512
          %s227 = scalar_lea.vmem [#allocation2], %s226
          %s228 = smul.u32 64, %s19
          %s230 = ssub.s32 8192, 8192
          %231 = vsyncadd %s224, %s230
          %s232 = smul.addr %s228, 128
          %s233 = scalar_lea.hbm %s0, %s232
          %s234 = sshll.u32 %s227, 4
          %s235 = int_to_ptr.vmem [resolvable:$true] %s234
          %240 = dma.hbm_to_vmem [thread:$0]  %s233, 8192, %s235, %s224, 128, 128, 8
        $region36: #{_residual_impl.1} parent=31 // pred_fallthru
          _
      $region32: #{_residual_impl.1} parent=5 // pred_fallthru
        _
      %p241 = scmp.le.s32.totalorder 1, %s19
      %p242 = scmp.lt.s32.totalorder %s19, 17
      %p243 = pnand %p241, %p242
      %p244 = pneg %p243
      // Predicated region
      $region37: #{_residual_impl.1} parent=5 // pred_check
        _
      $region38: #{_residual_impl.1} parent=5 // pred_check_branch
        %246 = sbr.rel (%p243) target = $region40
      $region39: #{_residual_impl.1} parent=5 // pred_region
        %s247 = ssub.s32 %s19, 1
        %s248 = sand.u32 %s32, 1
        %s249 = scalar_lea.sflag [#allocation3], %s248
        %s250 = sand.u32 %s32, 1
        %s251 = smul.addr %s250, 512
        %s252 = scalar_lea.vmem [#allocation2], %s251
        // Predicated region
        $region41: #{_residual_impl.1} parent=39 // pred_check
          %p253 = pneg %p45
        $region42: #{_residual_impl.1} parent=39 // pred_check_branch
          %255 = sbr.rel (%p253) target = $region44
        $region43: #{_residual_impl.1} parent=39 // pred_region
          %256 = dma.done %s249, 8192
        $region44: #{_residual_impl.1} parent=39 // pred_fallthru
          _
        // Predicated region
        $region45: #{_residual_impl.1} parent=39 // pred_check
          %p257 = pneg %p66
        $region46: #{_residual_impl.1} parent=39 // pred_check_branch
          %259 = sbr.rel (%p257) target = $region48
        $region47: #{_residual_impl.1} parent=39 // pred_region
          %260 = dma.done [#allocation6], 1024
        $region48: #{_residual_impl.1} parent=39 // pred_fallthru
          _
        // Predicated region
        $region49: #{_residual_impl.1} parent=39 // pred_check
          %p261 = pneg %p87
        $region50: #{_residual_impl.1} parent=39 // pred_check_branch
          %263 = sbr.rel (%p261) target = $region52
        $region51: #{_residual_impl.1} parent=39 // pred_region
          %264 = dma.done [#allocation6], 16
        $region52: #{_residual_impl.1} parent=39 // pred_fallthru
          _
        // Predicated region
        $region53: #{_residual_impl.1} parent=39 // pred_check
          %p265 = pneg %p108
        $region54: #{_residual_impl.1} parent=39 // pred_check_branch
          %267 = sbr.rel (%p265) target = $region56
        $region55: #{_residual_impl.1} parent=39 // pred_region
          %268 = dma.done [#allocation9], 16
        $region56: #{_residual_impl.1} parent=39 // pred_fallthru
          _
        // Predicated region
        $region57: #{_residual_impl.1} parent=39 // pred_check
          %p269 = pneg %p129
        $region58: #{_residual_impl.1} parent=39 // pred_check_branch
          %271 = sbr.rel (%p269) target = $region60
        $region59: #{_residual_impl.1} parent=39 // pred_region
          %272 = dma.done [#allocation9], 16
        $region60: #{_residual_impl.1} parent=39 // pred_fallthru
          _
        %s273 = sand.u32 %s32, 1
        %s274 = scalar_lea.sflag [#allocation3], %s273
        %s275 = sand.u32 %s32, 1
        %s276 = smul.addr %s275, 512
        %s277 = scalar_lea.vmem [#allocation2], %s276
        %p278 = pneg %p45
        %p279 = pneg %p42
        %p280 = pneg %p66
        %p281 = pneg %p63
        %p282 = pneg %p87
        %p283 = pneg %p84
        %p284 = pneg %p108
        %p285 = pneg %p105
        %p286 = pneg %p129
        %p287 = pneg %p126
        %p288 = pneg %p155
        %p289 = pneg %p152
        %s290 = sand.u32 %s142, 1
        %s291 = scalar_lea.sflag [#allocation4], %s290
        %s292 = sand.u32 %s142, 1
        %s293 = smul.addr %s292, 512
        %s294 = scalar_lea.vmem [#allocation11], %s293
        %s295 = smul.u32 64, %s24
        %s296 = smul.u32 64, %s24
        %v298 = vld [vmem:[%s252] sm:$0xff]
        %v299 = vld [vmem:[%s252 + $0x8] sm:$0xff]
        %v300 = vld [vmem:[%s252 + $0x10] sm:$0xff]
        %v301 = vld [vmem:[%s252 + $0x18] sm:$0xff]
        %v302 = vld [vmem:[%s252 + $0x20] sm:$0xff]
        %v303 = vld [vmem:[%s252 + $0x28] sm:$0xff]
        %v304 = vld [vmem:[%s252 + $0x30] sm:$0xff]
        %v305 = vld [vmem:[%s252 + $0x38] sm:$0xff]
        %v306 = vld [vmem:[%s252 + $0x40] sm:$0xff]
        %v307 = vld [vmem:[%s252 + $0x48] sm:$0xff]
        %v308 = vld [vmem:[%s252 + $0x50] sm:$0xff]
        %v309 = vld [vmem:[%s252 + $0x58] sm:$0xff]
        %v310 = vld [vmem:[%s252 + $0x60] sm:$0xff]
        %v311 = vld [vmem:[%s252 + $0x68] sm:$0xff]
        %v312 = vld [vmem:[%s252 + $0x70] sm:$0xff]
        %v313 = vld [vmem:[%s252 + $0x78] sm:$0xff]
        %v314 = vld [vmem:[%s252 + $0x80] sm:$0xff]
        %v315 = vld [vmem:[%s252 + $0x88] sm:$0xff]
        %v316 = vld [vmem:[%s252 + $0x90] sm:$0xff]
        %v317 = vld [vmem:[%s252 + $0x98] sm:$0xff]
        %v318 = vld [vmem:[%s252 + $0xa0] sm:$0xff]
        %v319 = vld [vmem:[%s252 + $0xa8] sm:$0xff]
        %v320 = vld [vmem:[%s252 + $0xb0] sm:$0xff]
        %v321 = vld [vmem:[%s252 + $0xb8] sm:$0xff]
        %v322 = vld [vmem:[%s252 + $0xc0] sm:$0xff]
        %v323 = vld [vmem:[%s252 + $0xc8] sm:$0xff]
        %v324 = vld [vmem:[%s252 + $0xd0] sm:$0xff]
        %v325 = vld [vmem:[%s252 + $0xd8] sm:$0xff]
        %v326 = vld [vmem:[%s252 + $0xe0] sm:$0xff]
        %v327 = vld [vmem:[%s252 + $0xe8] sm:$0xff]
        %v328 = vld [vmem:[%s252 + $0xf0] sm:$0xff]
        %v329 = vld [vmem:[%s252 + $0xf8] sm:$0xff]
        %v330 = vld [vmem:[%s252 + $0x100] sm:$0xff]
        %v331 = vld [vmem:[%s252 + $0x108] sm:$0xff]
        %v332 = vld [vmem:[%s252 + $0x110] sm:$0xff]
        %v333 = vld [vmem:[%s252 + $0x118] sm:$0xff]
        %v334 = vld [vmem:[%s252 + $0x120] sm:$0xff]
        %v335 = vld [vmem:[%s252 + $0x128] sm:$0xff]
        %v336 = vld [vmem:[%s252 + $0x130] sm:$0xff]
        %v337 = vld [vmem:[%s252 + $0x138] sm:$0xff]
        %v338 = vld [vmem:[%s252 + $0x140] sm:$0xff]
        %v339 = vld [vmem:[%s252 + $0x148] sm:$0xff]
        %v340 = vld [vmem:[%s252 + $0x150] sm:$0xff]
        %v341 = vld [vmem:[%s252 + $0x158] sm:$0xff]
        %v342 = vld [vmem:[%s252 + $0x160] sm:$0xff]
        %v343 = vld [vmem:[%s252 + $0x168] sm:$0xff]
        %v344 = vld [vmem:[%s252 + $0x170] sm:$0xff]
        %v345 = vld [vmem:[%s252 + $0x178] sm:$0xff]
        %v346 = vld [vmem:[%s252 + $0x180] sm:$0xff]
        %v347 = vld [vmem:[%s252 + $0x188] sm:$0xff]
        %v348 = vld [vmem:[%s252 + $0x190] sm:$0xff]
        %v349 = vld [vmem:[%s252 + $0x198] sm:$0xff]
        %v350 = vld [vmem:[%s252 + $0x1a0] sm:$0xff]
        %v351 = vld [vmem:[%s252 + $0x1a8] sm:$0xff]
        %v352 = vld [vmem:[%s252 + $0x1b0] sm:$0xff]
        %v353 = vld [vmem:[%s252 + $0x1b8] sm:$0xff]
        %v354 = vld [vmem:[%s252 + $0x1c0] sm:$0xff]
        %v355 = vld [vmem:[%s252 + $0x1c8] sm:$0xff]
        %v356 = vld [vmem:[%s252 + $0x1d0] sm:$0xff]
        %v357 = vld [vmem:[%s252 + $0x1d8] sm:$0xff]
        %v358 = vld [vmem:[%s252 + $0x1e0] sm:$0xff]
        %v359 = vld [vmem:[%s252 + $0x1e8] sm:$0xff]
        %v360 = vld [vmem:[%s252 + $0x1f0] sm:$0xff]
        %v361 = vld [vmem:[%s252 + $0x1f8] sm:$0xff]
        %v362 = vpack.c.bf16 %v299, %v298
        %v363 = vpack.c.bf16 %v301, %v300
        %v364 = vpack.c.bf16 %v303, %v302
        %v365 = vpack.c.bf16 %v305, %v304
        %v366 = vpack.c.bf16 %v307, %v306
        %v367 = vpack.c.bf16 %v309, %v308
        %v368 = vpack.c.bf16 %v311, %v310
        %v369 = vpack.c.bf16 %v313, %v312
        %v370 = vpack.c.bf16 %v315, %v314
        %v371 = vpack.c.bf16 %v317, %v316
        %v372 = vpack.c.bf16 %v319, %v318
        %v373 = vpack.c.bf16 %v321, %v320
        %v374 = vpack.c.bf16 %v323, %v322
        %v375 = vpack.c.bf16 %v325, %v324
        %v376 = vpack.c.bf16 %v327, %v326
        %v377 = vpack.c.bf16 %v329, %v328
        %v378 = vpack.c.bf16 %v331, %v330
        %v379 = vpack.c.bf16 %v333, %v332
        %v380 = vpack.c.bf16 %v335, %v334
        %v381 = vpack.c.bf16 %v337, %v336
        %v382 = vpack.c.bf16 %v339, %v338
        %v383 = vpack.c.bf16 %v341, %v340
        %v384 = vpack.c.bf16 %v343, %v342
        %v385 = vpack.c.bf16 %v345, %v344
        %v386 = vpack.c.bf16 %v347, %v346
        %v387 = vpack.c.bf16 %v349, %v348
        %v388 = vpack.c.bf16 %v351, %v350
        %v389 = vpack.c.bf16 %v353, %v352
        %v390 = vpack.c.bf16 %v355, %v354
        %v391 = vpack.c.bf16 %v357, %v356
        %v392 = vpack.c.bf16 %v359, %v358
        %v393 = vpack.c.bf16 %v361, %v360
        %v394 = vld [vmem:[#allocation5] sm:$0xf]
        %v395 = vld [vmem:[#allocation5 + $0x4] sm:$0xf]
        %v396 = vld [vmem:[#allocation5 + $0x8] sm:$0xf]
        %v397 = vld [vmem:[#allocation5 + $0xc] sm:$0xf]
        %v398 = vld [vmem:[#allocation5 + $0x10] sm:$0xf]
        %v399 = vld [vmem:[#allocation5 + $0x14] sm:$0xf]
        %v400 = vld [vmem:[#allocation5 + $0x18] sm:$0xf]
        %v401 = vld [vmem:[#allocation5 + $0x1c] sm:$0xf]
        %v402 = vld [vmem:[#allocation5 + $0x20] sm:$0xf]
        %v403 = vld [vmem:[#allocation5 + $0x24] sm:$0xf]
        %v404 = vld [vmem:[#allocation5 + $0x28] sm:$0xf]
        %v405 = vld [vmem:[#allocation5 + $0x2c] sm:$0xf]
        %v406 = vld [vmem:[#allocation5 + $0x30] sm:$0xf]
        %v407 = vld [vmem:[#allocation5 + $0x34] sm:$0xf]
        %v408 = vld [vmem:[#allocation5 + $0x38] sm:$0xf]
        %v409 = vld [vmem:[#allocation5 + $0x3c] sm:$0xf]
        %v410 = vld [vmem:[#allocation7] sm:$0x1]
        %v412 = vlaneseq
        %v413 = vshrl.u32 %v412, 7
        %v414 = vsub.s32 0, %v413
        %v415 = vrot.slane %v410, %v414
        %v433 = vunpack.c.l.b16 %v394
        %v434 = vunpack.c.l.b16 %v395
        %v435 = vunpack.c.l.b16 %v396
        %v436 = vunpack.c.l.b16 %v397
        %v437 = vunpack.c.l.b16 %v398
        %v438 = vunpack.c.l.b16 %v399
        %v439 = vunpack.c.l.b16 %v400
        %v440 = vunpack.c.l.b16 %v401
        %v441 = vunpack.c.l.b16 %v402
        %v442 = vunpack.c.l.b16 %v403
        %v443 = vunpack.c.l.b16 %v404
        %v444 = vunpack.c.l.b16 %v405
        %v445 = vunpack.c.l.b16 %v406
        %v446 = vunpack.c.l.b16 %v407
        %v447 = vunpack.c.l.b16 %v408
        %v448 = vunpack.c.l.b16 %v409
        %v449 = vpack.c.b16 %v434, %v433
        %v450 = vpack.c.b16 %v436, %v435
        %v451 = vpack.c.b16 %v438, %v437
        %v452 = vpack.c.b16 %v440, %v439
        %v453 = vpack.c.b16 %v442, %v441
        %v454 = vpack.c.b16 %v444, %v443
        %v455 = vpack.c.b16 %v446, %v445
        %v456 = vpack.c.b16 %v448, %v447
        %465 = vmatprep.subr.bf16.mxu0 0
        %466 = vmatpush1.bf16.msra.mxu0 %v456
        %467 = vmatprep.subr.bf16.mxu0 0
        %468 = vmatpush1.bf16.msra.mxu0 %v455
        %469 = vmatprep.subr.bf16.mxu0 0
        %470 = vmatpush1.bf16.msra.mxu0 %v454
        %471 = vmatprep.subr.bf16.mxu0 0
        %472 = vmatpush1.bf16.msra.mxu0 %v453
        %473 = vmatprep.subr.bf16.mxu0 0
        %474 = vmatpush1.bf16.msra.mxu0 %v452
        %475 = vmatprep.subr.bf16.mxu0 0
        %476 = vmatpush1.bf16.msra.mxu0 %v451
        %477 = vmatprep.subr.bf16.mxu0 0
        %478 = vmatpush1.bf16.msra.mxu0 %v450
        %479 = vmatprep.subr.bf16.mxu0 0
        %480 = vmatpush1.bf16.msra.mxu0 %v449
        %481 = vmatprep.subr.bf16.mxu0 0
        %482 = vmatpush2.bf16.msra.mxu0 0
        %483 = vmatprep.subr.bf16.mxu0 0
        %484 = vmatpush2.bf16.msra.mxu0 0
        %485 = vmatprep.subr.bf16.mxu0 0
        %486 = vmatpush2.bf16.msra.mxu0 0
        %487 = vmatprep.subr.bf16.mxu0 0
        %488 = vmatpush2.bf16.msra.mxu0 0
        %489 = vmatprep.subr.bf16.mxu0 0
        %490 = vmatpush2.bf16.msra.mxu0 0
        %491 = vmatprep.subr.bf16.mxu0 0
        %492 = vmatpush2.bf16.msra.mxu0 0
        %493 = vmatprep.subr.bf16.mxu0 0
        %494 = vmatpush2.bf16.msra.mxu0 0
        %495 = vmatprep.subr.bf16.mxu0 0
        %496 = vmatpush2.bf16.msra.mxu0 0
        %497 = vmatprep.mubr.bf16.mxu0 0
        %498 = vmatmul.mubr.bf16.gmra.mxu0 %v362
        %v499 = vpop.f32.mrf.mxu0
        %v500 = vadd.f32 %v415, %v499
        %v501 = vpop.f32.mrf.mxu0
        %v502 = vpop.f32.mrf.mxu0
        %v503 = vadd.f32 %v415, %v502
        %v504 = vpop.f32.mrf.mxu0
        %505 = vmatprep.mubr.bf16.mxu0 0
        %506 = vmatmul.mubr.bf16.gmra.mxu0 %v363
        %v507 = vpop.f32.mrf.mxu0
        %v508 = vadd.f32 %v415, %v507
        %v509 = vpop.f32.mrf.mxu0
        %v510 = vpop.f32.mrf.mxu0
        %v511 = vadd.f32 %v415, %v510
        %v512 = vpop.f32.mrf.mxu0
        %513 = vmatprep.mubr.bf16.mxu0 0
        %514 = vmatmul.mubr.bf16.gmra.mxu0 %v364
        %v515 = vpop.f32.mrf.mxu0
        %v516 = vadd.f32 %v415, %v515
        %v517 = vpop.f32.mrf.mxu0
        %v518 = vpop.f32.mrf.mxu0
        %v519 = vadd.f32 %v415, %v518
        %v520 = vpop.f32.mrf.mxu0
        %521 = vmatprep.mubr.bf16.mxu0 0
        %522 = vmatmul.mubr.bf16.gmra.mxu0 %v365
        %v523 = vpop.f32.mrf.mxu0
        %v524 = vadd.f32 %v415, %v523
        %v525 = vpop.f32.mrf.mxu0
        %v526 = vpop.f32.mrf.mxu0
        %v527 = vadd.f32 %v415, %v526
        %v528 = vpop.f32.mrf.mxu0
        %529 = vmatprep.mubr.bf16.mxu0 0
        %530 = vmatmul.mubr.bf16.gmra.mxu0 %v366
        %v531 = vpop.f32.mrf.mxu0
        %v532 = vadd.f32 %v415, %v531
        %v533 = vpop.f32.mrf.mxu0
        %v534 = vpop.f32.mrf.mxu0
        %v535 = vadd.f32 %v415, %v534
        %v536 = vpop.f32.mrf.mxu0
        %537 = vmatprep.mubr.bf16.mxu0 0
        %538 = vmatmul.mubr.bf16.gmra.mxu0 %v367
        %v539 = vpop.f32.mrf.mxu0
        %v540 = vadd.f32 %v415, %v539
        %v541 = vpop.f32.mrf.mxu0
        %v542 = vpop.f32.mrf.mxu0
        %v543 = vadd.f32 %v415, %v542
        %v544 = vpop.f32.mrf.mxu0
        %545 = vmatprep.mubr.bf16.mxu0 0
        %546 = vmatmul.mubr.bf16.gmra.mxu0 %v368
        %v547 = vpop.f32.mrf.mxu0
        %v548 = vadd.f32 %v415, %v547
        %v549 = vpop.f32.mrf.mxu0
        %v550 = vpop.f32.mrf.mxu0
        %v551 = vadd.f32 %v415, %v550
        %v552 = vpop.f32.mrf.mxu0
        %553 = vmatprep.mubr.bf16.mxu0 0
        %554 = vmatmul.mubr.bf16.gmra.mxu0 %v369
        %v555 = vpop.f32.mrf.mxu0
        %v556 = vadd.f32 %v415, %v555
        %v557 = vpop.f32.mrf.mxu0
        %v558 = vpop.f32.mrf.mxu0
        %v559 = vadd.f32 %v415, %v558
        %v560 = vpop.f32.mrf.mxu0
        %561 = vmatprep.mubr.bf16.mxu0 0
        %562 = vmatmul.mubr.bf16.gmra.mxu0 %v370
        %v563 = vpop.f32.mrf.mxu0
        %v564 = vadd.f32 %v415, %v563
        %v565 = vpop.f32.mrf.mxu0
        %v566 = vpop.f32.mrf.mxu0
        %v567 = vadd.f32 %v415, %v566
        %v568 = vpop.f32.mrf.mxu0
        %569 = vmatprep.mubr.bf16.mxu0 0
        %570 = vmatmul.mubr.bf16.gmra.mxu0 %v371
        %v571 = vpop.f32.mrf.mxu0
        %v572 = vadd.f32 %v415, %v571
        %v573 = vpop.f32.mrf.mxu0
        %v574 = vpop.f32.mrf.mxu0
        %v575 = vadd.f32 %v415, %v574
        %v576 = vpop.f32.mrf.mxu0
        %577 = vmatprep.mubr.bf16.mxu0 0
        %578 = vmatmul.mubr.bf16.gmra.mxu0 %v372
        %v579 = vpop.f32.mrf.mxu0
        %v580 = vadd.f32 %v415, %v579
        %v581 = vpop.f32.mrf.mxu0
        %v582 = vpop.f32.mrf.mxu0
        %v583 = vadd.f32 %v415, %v582
        %v584 = vpop.f32.mrf.mxu0
        %585 = vmatprep.mubr.bf16.mxu0 0
        %586 = vmatmul.mubr.bf16.gmra.mxu0 %v373
        %v587 = vpop.f32.mrf.mxu0
        %v588 = vadd.f32 %v415, %v587
        %v589 = vpop.f32.mrf.mxu0
        %v590 = vpop.f32.mrf.mxu0
        %v591 = vadd.f32 %v415, %v590
        %v592 = vpop.f32.mrf.mxu0
        %593 = vmatprep.mubr.bf16.mxu0 0
        %594 = vmatmul.mubr.bf16.gmra.mxu0 %v374
        %v595 = vpop.f32.mrf.mxu0
        %v596 = vadd.f32 %v415, %v595
        %v597 = vpop.f32.mrf.mxu0
        %v598 = vpop.f32.mrf.mxu0
        %v599 = vadd.f32 %v415, %v598
        %v600 = vpop.f32.mrf.mxu0
        %601 = vmatprep.mubr.bf16.mxu0 0
        %602 = vmatmul.mubr.bf16.gmra.mxu0 %v375
        %v603 = vpop.f32.mrf.mxu0
        %v604 = vadd.f32 %v415, %v603
        %v605 = vpop.f32.mrf.mxu0
        %v606 = vpop.f32.mrf.mxu0
        %v607 = vadd.f32 %v415, %v606
        %v608 = vpop.f32.mrf.mxu0
        %609 = vmatprep.mubr.bf16.mxu0 0
        %610 = vmatmul.mubr.bf16.gmra.mxu0 %v376
        %v611 = vpop.f32.mrf.mxu0
        %v612 = vadd.f32 %v415, %v611
        %v613 = vpop.f32.mrf.mxu0
        %v614 = vpop.f32.mrf.mxu0
        %v615 = vadd.f32 %v415, %v614
        %v616 = vpop.f32.mrf.mxu0
        %617 = vmatprep.mubr.bf16.mxu0 0
        %618 = vmatmul.mubr.bf16.gmra.mxu0 %v377
        %v619 = vpop.f32.mrf.mxu0
        %v620 = vadd.f32 %v415, %v619
        %v621 = vpop.f32.mrf.mxu0
        %v622 = vpop.f32.mrf.mxu0
        %v623 = vadd.f32 %v415, %v622
        %v624 = vpop.f32.mrf.mxu0
        %625 = vmatprep.mubr.bf16.mxu0 0
        %626 = vmatmul.mubr.bf16.gmra.mxu0 %v378
        %v627 = vpop.f32.mrf.mxu0
        %v628 = vadd.f32 %v415, %v627
        %v629 = vpop.f32.mrf.mxu0
        %v630 = vpop.f32.mrf.mxu0
        %v631 = vadd.f32 %v415, %v630
        %v632 = vpop.f32.mrf.mxu0
        %633 = vmatprep.mubr.bf16.mxu0 0
        %634 = vmatmul.mubr.bf16.gmra.mxu0 %v379
        %v635 = vpop.f32.mrf.mxu0
        %v636 = vadd.f32 %v415, %v635
        %v637 = vpop.f32.mrf.mxu0
        %v638 = vpop.f32.mrf.mxu0
        %v639 = vadd.f32 %v415, %v638
        %v640 = vpop.f32.mrf.mxu0
        %641 = vmatprep.mubr.bf16.mxu0 0
        %642 = vmatmul.mubr.bf16.gmra.mxu0 %v380
        %v643 = vpop.f32.mrf.mxu0
        %v644 = vadd.f32 %v415, %v643
        %v645 = vpop.f32.mrf.mxu0
        %v646 = vpop.f32.mrf.mxu0
        %v647 = vadd.f32 %v415, %v646
        %v648 = vpop.f32.mrf.mxu0
        %649 = vmatprep.mubr.bf16.mxu0 0
        %650 = vmatmul.mubr.bf16.gmra.mxu0 %v381
        %v651 = vpop.f32.mrf.mxu0
        %v652 = vadd.f32 %v415, %v651
        %v653 = vpop.f32.mrf.mxu0
        %v654 = vpop.f32.mrf.mxu0
        %v655 = vadd.f32 %v415, %v654
        %v656 = vpop.f32.mrf.mxu0
        %657 = vmatprep.mubr.bf16.mxu0 0
        %658 = vmatmul.mubr.bf16.gmra.mxu0 %v382
        %v659 = vpop.f32.mrf.mxu0
        %v660 = vadd.f32 %v415, %v659
        %v661 = vpop.f32.mrf.mxu0
        %v662 = vpop.f32.mrf.mxu0
        %v663 = vadd.f32 %v415, %v662
        %v664 = vpop.f32.mrf.mxu0
        %665 = vmatprep.mubr.bf16.mxu0 0
        %666 = vmatmul.mubr.bf16.gmra.mxu0 %v383
        %v667 = vpop.f32.mrf.mxu0
        %v668 = vadd.f32 %v415, %v667
        %v669 = vpop.f32.mrf.mxu0
        %v670 = vpop.f32.mrf.mxu0
        %v671 = vadd.f32 %v415, %v670
        %v672 = vpop.f32.mrf.mxu0
        %673 = vmatprep.mubr.bf16.mxu0 0
        %674 = vmatmul.mubr.bf16.gmra.mxu0 %v384
        %v675 = vpop.f32.mrf.mxu0
        %v676 = vadd.f32 %v415, %v675
        %v677 = vpop.f32.mrf.mxu0
        %v678 = vpop.f32.mrf.mxu0
        %v679 = vadd.f32 %v415, %v678
        %v680 = vpop.f32.mrf.mxu0
        %681 = vmatprep.mubr.bf16.mxu0 0
        %682 = vmatmul.mubr.bf16.gmra.mxu0 %v385
        %v683 = vpop.f32.mrf.mxu0
        %v684 = vadd.f32 %v415, %v683
        %v685 = vpop.f32.mrf.mxu0
        %v686 = vpop.f32.mrf.mxu0
        %v687 = vadd.f32 %v415, %v686
        %v688 = vpop.f32.mrf.mxu0
        %689 = vmatprep.mubr.bf16.mxu0 0
        %690 = vmatmul.mubr.bf16.gmra.mxu0 %v386
        %v691 = vpop.f32.mrf.mxu0
        %v692 = vadd.f32 %v415, %v691
        %v693 = vpop.f32.mrf.mxu0
        %v694 = vpop.f32.mrf.mxu0
        %v695 = vadd.f32 %v415, %v694
        %v696 = vpop.f32.mrf.mxu0
        %697 = vmatprep.mubr.bf16.mxu0 0
        %698 = vmatmul.mubr.bf16.gmra.mxu0 %v387
        %v699 = vpop.f32.mrf.mxu0
        %v700 = vadd.f32 %v415, %v699
        %v701 = vpop.f32.mrf.mxu0
        %v702 = vpop.f32.mrf.mxu0
        %v703 = vadd.f32 %v415, %v702
        %v704 = vpop.f32.mrf.mxu0
        %705 = vmatprep.mubr.bf16.mxu0 0
        %706 = vmatmul.mubr.bf16.gmra.mxu0 %v388
        %v707 = vpop.f32.mrf.mxu0
        %v708 = vadd.f32 %v415, %v707
        %v709 = vpop.f32.mrf.mxu0
        %v710 = vpop.f32.mrf.mxu0
        %v711 = vadd.f32 %v415, %v710
        %v712 = vpop.f32.mrf.mxu0
        %713 = vmatprep.mubr.bf16.mxu0 0
        %714 = vmatmul.mubr.bf16.gmra.mxu0 %v389
        %v715 = vpop.f32.mrf.mxu0
        %v716 = vadd.f32 %v415, %v715
        %v717 = vpop.f32.mrf.mxu0
        %v718 = vpop.f32.mrf.mxu0
        %v719 = vadd.f32 %v415, %v718
        %v720 = vpop.f32.mrf.mxu0
        %721 = vmatprep.mubr.bf16.mxu0 0
        %722 = vmatmul.mubr.bf16.gmra.mxu0 %v390
        %v723 = vpop.f32.mrf.mxu0
        %v724 = vadd.f32 %v415, %v723
        %v725 = vpop.f32.mrf.mxu0
        %v726 = vpop.f32.mrf.mxu0
        %v727 = vadd.f32 %v415, %v726
        %v728 = vpop.f32.mrf.mxu0
        %729 = vmatprep.mubr.bf16.mxu0 0
        %730 = vmatmul.mubr.bf16.gmra.mxu0 %v391
        %v731 = vpop.f32.mrf.mxu0
        %v732 = vadd.f32 %v415, %v731
        %v733 = vpop.f32.mrf.mxu0
        %v734 = vpop.f32.mrf.mxu0
        %v735 = vadd.f32 %v415, %v734
        %v736 = vpop.f32.mrf.mxu0
        %737 = vmatprep.mubr.bf16.mxu0 0
        %738 = vmatmul.mubr.bf16.gmra.mxu0 %v392
        %v739 = vpop.f32.mrf.mxu0
        %v740 = vadd.f32 %v415, %v739
        %v741 = vpop.f32.mrf.mxu0
        %v742 = vpop.f32.mrf.mxu0
        %v743 = vadd.f32 %v415, %v742
        %v744 = vpop.f32.mrf.mxu0
        %745 = vmatprep.mubr.bf16.mxu0 0
        %746 = vmatmul.mubr.bf16.gmra.mxu0 %v393
        %v747 = vpop.f32.mrf.mxu0
        %v748 = vadd.f32 %v415, %v747
        %v749 = vpop.f32.mrf.mxu0
        %v750 = vpop.f32.mrf.mxu0
        %v751 = vadd.f32 %v415, %v750
        %v752 = vpop.f32.mrf.mxu0
        %753 = vdwg.mxu0
        %v754 = vadd.f32 %v298, %v500
        %v755 = vadd.f32 %v299, %v503
        %v756 = vadd.f32 %v300, %v508
        %v757 = vadd.f32 %v301, %v511
        %v758 = vadd.f32 %v302, %v516
        %v759 = vadd.f32 %v303, %v519
        %v760 = vadd.f32 %v304, %v524
        %v761 = vadd.f32 %v305, %v527
        %v762 = vadd.f32 %v306, %v532
        %v763 = vadd.f32 %v307, %v535
        %v764 = vadd.f32 %v308, %v540
        %v765 = vadd.f32 %v309, %v543
        %v766 = vadd.f32 %v310, %v548
        %v767 = vadd.f32 %v311, %v551
        %v768 = vadd.f32 %v312, %v556
        %v769 = vadd.f32 %v313, %v559
        %v770 = vadd.f32 %v314, %v564
        %v771 = vadd.f32 %v315, %v567
        %v772 = vadd.f32 %v316, %v572
        %v773 = vadd.f32 %v317, %v575
        %v774 = vadd.f32 %v318, %v580
        %v775 = vadd.f32 %v319, %v583
        %v776 = vadd.f32 %v320, %v588
        %v777 = vadd.f32 %v321, %v591
        %v778 = vadd.f32 %v322, %v596
        %v779 = vadd.f32 %v323, %v599
        %v780 = vadd.f32 %v324, %v604
        %v781 = vadd.f32 %v325, %v607
        %v782 = vadd.f32 %v326, %v612
        %v783 = vadd.f32 %v327, %v615
        %v784 = vadd.f32 %v328, %v620
        %v785 = vadd.f32 %v329, %v623
        %v786 = vadd.f32 %v330, %v628
        %v787 = vadd.f32 %v331, %v631
        %v788 = vadd.f32 %v332, %v636
        %v789 = vadd.f32 %v333, %v639
        %v790 = vadd.f32 %v334, %v644
        %v791 = vadd.f32 %v335, %v647
        %v792 = vadd.f32 %v336, %v652
        %v793 = vadd.f32 %v337, %v655
        %v794 = vadd.f32 %v338, %v660
        %v795 = vadd.f32 %v339, %v663
        %v796 = vadd.f32 %v340, %v668
        %v797 = vadd.f32 %v341, %v671
        %v798 = vadd.f32 %v342, %v676
        %v799 = vadd.f32 %v343, %v679
        %v800 = vadd.f32 %v344, %v684
        %v801 = vadd.f32 %v345, %v687
        %v802 = vadd.f32 %v346, %v692
        %v803 = vadd.f32 %v347, %v695
        %v804 = vadd.f32 %v348, %v700
        %v805 = vadd.f32 %v349, %v703
        %v806 = vadd.f32 %v350, %v708
        %v807 = vadd.f32 %v351, %v711
        %v808 = vadd.f32 %v352, %v716
        %v809 = vadd.f32 %v353, %v719
        %v810 = vadd.f32 %v354, %v724
        %v811 = vadd.f32 %v355, %v727
        %v812 = vadd.f32 %v356, %v732
        %v813 = vadd.f32 %v357, %v735
        %v814 = vadd.f32 %v358, %v740
        %v815 = vadd.f32 %v359, %v743
        %v816 = vadd.f32 %v360, %v748
        %v817 = vadd.f32 %v361, %v751
        %818 = vadd.xlane.f32.xlu0 %v754
        %v819 = vpop.xlane.xlu0 %818
        %820 = vadd.xlane.f32.xlu0 %v755
        %v821 = vpop.xlane.xlu0 %820
        %822 = vadd.xlane.f32.xlu0 %v756
        %v823 = vpop.xlane.xlu0 %822
        %824 = vadd.xlane.f32.xlu0 %v757
        %v825 = vpop.xlane.xlu0 %824
        %826 = vadd.xlane.f32.xlu0 %v758
        %v827 = vpop.xlane.xlu0 %826
        %828 = vadd.xlane.f32.xlu0 %v759
        %v829 = vpop.xlane.xlu0 %828
        %830 = vadd.xlane.f32.xlu0 %v760
        %v831 = vpop.xlane.xlu0 %830
        %832 = vadd.xlane.f32.xlu0 %v761
        %v833 = vpop.xlane.xlu0 %832
        %834 = vadd.xlane.f32.xlu0 %v762
        %v835 = vpop.xlane.xlu0 %834
        %836 = vadd.xlane.f32.xlu0 %v763
        %v837 = vpop.xlane.xlu0 %836
        %838 = vadd.xlane.f32.xlu0 %v764
        %v839 = vpop.xlane.xlu0 %838
        %840 = vadd.xlane.f32.xlu0 %v765
        %v841 = vpop.xlane.xlu0 %840
        %842 = vadd.xlane.f32.xlu0 %v766
        %v843 = vpop.xlane.xlu0 %842
        %844 = vadd.xlane.f32.xlu0 %v767
        %v845 = vpop.xlane.xlu0 %844
        %846 = vadd.xlane.f32.xlu0 %v768
        %v847 = vpop.xlane.xlu0 %846
        %848 = vadd.xlane.f32.xlu0 %v769
        %v849 = vpop.xlane.xlu0 %848
        %850 = vadd.xlane.f32.xlu0 %v770
        %v851 = vpop.xlane.xlu0 %850
        %852 = vadd.xlane.f32.xlu0 %v771
        %v853 = vpop.xlane.xlu0 %852
        %854 = vadd.xlane.f32.xlu0 %v772
        %v855 = vpop.xlane.xlu0 %854
        %856 = vadd.xlane.f32.xlu0 %v773
        %v857 = vpop.xlane.xlu0 %856
        %858 = vadd.xlane.f32.xlu0 %v774
        %v859 = vpop.xlane.xlu0 %858
        %860 = vadd.xlane.f32.xlu0 %v775
        %v861 = vpop.xlane.xlu0 %860
        %862 = vadd.xlane.f32.xlu0 %v776
        %v863 = vpop.xlane.xlu0 %862
        %864 = vadd.xlane.f32.xlu0 %v777
        %v865 = vpop.xlane.xlu0 %864
        %866 = vadd.xlane.f32.xlu0 %v778
        %v867 = vpop.xlane.xlu0 %866
        %868 = vadd.xlane.f32.xlu0 %v779
        %v869 = vpop.xlane.xlu0 %868
        %870 = vadd.xlane.f32.xlu0 %v780
        %v871 = vpop.xlane.xlu0 %870
        %872 = vadd.xlane.f32.xlu0 %v781
        %v873 = vpop.xlane.xlu0 %872
        %874 = vadd.xlane.f32.xlu0 %v782
        %v875 = vpop.xlane.xlu0 %874
        %876 = vadd.xlane.f32.xlu0 %v783
        %v877 = vpop.xlane.xlu0 %876
        %878 = vadd.xlane.f32.xlu0 %v784
        %v879 = vpop.xlane.xlu0 %878
        %880 = vadd.xlane.f32.xlu0 %v785
        %v881 = vpop.xlane.xlu0 %880
        %882 = vadd.xlane.f32.xlu0 %v786
        %v883 = vpop.xlane.xlu0 %882
        %884 = vadd.xlane.f32.xlu0 %v787
        %v885 = vpop.xlane.xlu0 %884
        %886 = vadd.xlane.f32.xlu0 %v788
        %v887 = vpop.xlane.xlu0 %886
        %888 = vadd.xlane.f32.xlu0 %v789
        %v889 = vpop.xlane.xlu0 %888
        %890 = vadd.xlane.f32.xlu0 %v790
        %v891 = vpop.xlane.xlu0 %890
        %892 = vadd.xlane.f32.xlu0 %v791
        %v893 = vpop.xlane.xlu0 %892
        %894 = vadd.xlane.f32.xlu0 %v792
        %v895 = vpop.xlane.xlu0 %894
        %896 = vadd.xlane.f32.xlu0 %v793
        %v897 = vpop.xlane.xlu0 %896
        %898 = vadd.xlane.f32.xlu0 %v794
        %v899 = vpop.xlane.xlu0 %898
        %900 = vadd.xlane.f32.xlu0 %v795
        %v901 = vpop.xlane.xlu0 %900
        %902 = vadd.xlane.f32.xlu0 %v796
        %v903 = vpop.xlane.xlu0 %902
        %904 = vadd.xlane.f32.xlu0 %v797
        %v905 = vpop.xlane.xlu0 %904
        %906 = vadd.xlane.f32.xlu0 %v798
        %v907 = vpop.xlane.xlu0 %906
        %908 = vadd.xlane.f32.xlu0 %v799
        %v909 = vpop.xlane.xlu0 %908
        %910 = vadd.xlane.f32.xlu0 %v800
        %v911 = vpop.xlane.xlu0 %910
        %912 = vadd.xlane.f32.xlu0 %v801
        %v913 = vpop.xlane.xlu0 %912
        %914 = vadd.xlane.f32.xlu0 %v802
        %v915 = vpop.xlane.xlu0 %914
        %916 = vadd.xlane.f32.xlu0 %v803
        %v917 = vpop.xlane.xlu0 %916
        %918 = vadd.xlane.f32.xlu0 %v804
        %v919 = vpop.xlane.xlu0 %918
        %920 = vadd.xlane.f32.xlu0 %v805
        %v921 = vpop.xlane.xlu0 %920
        %922 = vadd.xlane.f32.xlu0 %v806
        %v923 = vpop.xlane.xlu0 %922
        %924 = vadd.xlane.f32.xlu0 %v807
        %v925 = vpop.xlane.xlu0 %924
        %926 = vadd.xlane.f32.xlu0 %v808
        %v927 = vpop.xlane.xlu0 %926
        %928 = vadd.xlane.f32.xlu0 %v809
        %v929 = vpop.xlane.xlu0 %928
        %930 = vadd.xlane.f32.xlu0 %v810
        %v931 = vpop.xlane.xlu0 %930
        %932 = vadd.xlane.f32.xlu0 %v811
        %v933 = vpop.xlane.xlu0 %932
        %934 = vadd.xlane.f32.xlu0 %v812
        %v935 = vpop.xlane.xlu0 %934
        %936 = vadd.xlane.f32.xlu0 %v813
        %v937 = vpop.xlane.xlu0 %936
        %938 = vadd.xlane.f32.xlu0 %v814
        %v939 = vpop.xlane.xlu0 %938
        %940 = vadd.xlane.f32.xlu0 %v815
        %v941 = vpop.xlane.xlu0 %940
        %942 = vadd.xlane.f32.xlu0 %v816
        %v943 = vpop.xlane.xlu0 %942
        %944 = vadd.xlane.f32.xlu0 %v817
        %v945 = vpop.xlane.xlu0 %944
        %v946 = vrcp.pop 128.0
        %v947 = vmul.f32 %v819, %v946
        %v948 = vmul.f32 %v821, %v946
        %v949 = vmul.f32 %v823, %v946
        %v950 = vmul.f32 %v825, %v946
        %v951 = vmul.f32 %v827, %v946
        %v952 = vmul.f32 %v829, %v946
        %v953 = vmul.f32 %v831, %v946
        %v954 = vmul.f32 %v833, %v946
        %v955 = vmul.f32 %v835, %v946
        %v956 = vmul.f32 %v837, %v946
        %v957 = vmul.f32 %v839, %v946
        %v958 = vmul.f32 %v841, %v946
        %v959 = vmul.f32 %v843, %v946
        %v960 = vmul.f32 %v845, %v946
        %v961 = vmul.f32 %v847, %v946
        %v962 = vmul.f32 %v849, %v946
        %v963 = vmul.f32 %v851, %v946
        %v964 = vmul.f32 %v853, %v946
        %v965 = vmul.f32 %v855, %v946
        %v966 = vmul.f32 %v857, %v946
        %v967 = vmul.f32 %v859, %v946
        %v968 = vmul.f32 %v861, %v946
        %v969 = vmul.f32 %v863, %v946
        %v970 = vmul.f32 %v865, %v946
        %v971 = vmul.f32 %v867, %v946
        %v972 = vmul.f32 %v869, %v946
        %v973 = vmul.f32 %v871, %v946
        %v974 = vmul.f32 %v873, %v946
        %v975 = vmul.f32 %v875, %v946
        %v976 = vmul.f32 %v877, %v946
        %v977 = vmul.f32 %v879, %v946
        %v978 = vmul.f32 %v881, %v946
        %v979 = vmul.f32 %v883, %v946
        %v980 = vmul.f32 %v885, %v946
        %v981 = vmul.f32 %v887, %v946
        %v982 = vmul.f32 %v889, %v946
        %v983 = vmul.f32 %v891, %v946
        %v984 = vmul.f32 %v893, %v946
        %v985 = vmul.f32 %v895, %v946
        %v986 = vmul.f32 %v897, %v946
        %v987 = vmul.f32 %v899, %v946
        %v988 = vmul.f32 %v901, %v946
        %v989 = vmul.f32 %v903, %v946
        %v990 = vmul.f32 %v905, %v946
        %v991 = vmul.f32 %v907, %v946
        %v992 = vmul.f32 %v909, %v946
        %v993 = vmul.f32 %v911, %v946
        %v994 = vmul.f32 %v913, %v946
        %v995 = vmul.f32 %v915, %v946
        %v996 = vmul.f32 %v917, %v946
        %v997 = vmul.f32 %v919, %v946
        %v998 = vmul.f32 %v921, %v946
        %v999 = vmul.f32 %v923, %v946
        %v1000 = vmul.f32 %v925, %v946
        %v1001 = vmul.f32 %v927, %v946
        %v1002 = vmul.f32 %v929, %v946
        %v1003 = vmul.f32 %v931, %v946
        %v1004 = vmul.f32 %v933, %v946
        %v1005 = vmul.f32 %v935, %v946
        %v1006 = vmul.f32 %v937, %v946
        %v1007 = vmul.f32 %v939, %v946
        %v1008 = vmul.f32 %v941, %v946
        %v1009 = vmul.f32 %v943, %v946
        %v1010 = vmul.f32 %v945, %v946
        %v1011 = vsub.f32 %v754, %v947
        %v1012 = vsub.f32 %v755, %v948
        %v1013 = vsub.f32 %v756, %v949
        %v1014 = vsub.f32 %v757, %v950
        %v1015 = vsub.f32 %v758, %v951
        %v1016 = vsub.f32 %v759, %v952
        %v1017 = vsub.f32 %v760, %v953
        %v1018 = vsub.f32 %v761, %v954
        %v1019 = vsub.f32 %v762, %v955
        %v1020 = vsub.f32 %v763, %v956
        %v1021 = vsub.f32 %v764, %v957
        %v1022 = vsub.f32 %v765, %v958
        %v1023 = vsub.f32 %v766, %v959
        %v1024 = vsub.f32 %v767, %v960
        %v1025 = vsub.f32 %v768, %v961
        %v1026 = vsub.f32 %v769, %v962
        %v1027 = vsub.f32 %v770, %v963
        %v1028 = vsub.f32 %v771, %v964
        %v1029 = vsub.f32 %v772, %v965
        %v1030 = vsub.f32 %v773, %v966
        %v1031 = vsub.f32 %v774, %v967
        %v1032 = vsub.f32 %v775, %v968
        %v1033 = vsub.f32 %v776, %v969
        %v1034 = vsub.f32 %v777, %v970
        %v1035 = vsub.f32 %v778, %v971
        %v1036 = vsub.f32 %v779, %v972
        %v1037 = vsub.f32 %v780, %v973
        %v1038 = vsub.f32 %v781, %v974
        %v1039 = vsub.f32 %v782, %v975
        %v1040 = vsub.f32 %v783, %v976
        %v1041 = vsub.f32 %v784, %v977
        %v1042 = vsub.f32 %v785, %v978
        %v1043 = vsub.f32 %v786, %v979
        %v1044 = vsub.f32 %v787, %v980
        %v1045 = vsub.f32 %v788, %v981
        %v1046 = vsub.f32 %v789, %v982
        %v1047 = vsub.f32 %v790, %v983
        %v1048 = vsub.f32 %v791, %v984
        %v1049 = vsub.f32 %v792, %v985
        %v1050 = vsub.f32 %v793, %v986
        %v1051 = vsub.f32 %v794, %v987
        %v1052 = vsub.f32 %v795, %v988
        %v1053 = vsub.f32 %v796, %v989
        %v1054 = vsub.f32 %v797, %v990
        %v1055 = vsub.f32 %v798, %v991
        %v1056 = vsub.f32 %v799, %v992
        %v1057 = vsub.f32 %v800, %v993
        %v1058 = vsub.f32 %v801, %v994
        %v1059 = vsub.f32 %v802, %v995
        %v1060 = vsub.f32 %v803, %v996
        %v1061 = vsub.f32 %v804, %v997
        %v1062 = vsub.f32 %v805, %v998
        %v1063 = vsub.f32 %v806, %v999
        %v1064 = vsub.f32 %v807, %v1000
        %v1065 = vsub.f32 %v808, %v1001
        %v1066 = vsub.f32 %v809, %v1002
        %v1067 = vsub.f32 %v810, %v1003
        %v1068 = vsub.f32 %v811, %v1004
        %v1069 = vsub.f32 %v812, %v1005
        %v1070 = vsub.f32 %v813, %v1006
        %v1071 = vsub.f32 %v814, %v1007
        %v1072 = vsub.f32 %v815, %v1008
        %v1073 = vsub.f32 %v816, %v1009
        %v1074 = vsub.f32 %v817, %v1010
        %v1075 = vmul.f32 %v1011, %v1011
        %v1076 = vmul.f32 %v1012, %v1012
        %v1077 = vmul.f32 %v1013, %v1013
        %v1078 = vmul.f32 %v1014, %v1014
        %v1079 = vmul.f32 %v1015, %v1015
        %v1080 = vmul.f32 %v1016, %v1016
        %v1081 = vmul.f32 %v1017, %v1017
        %v1082 = vmul.f32 %v1018, %v1018
        %v1083 = vmul.f32 %v1019, %v1019
        %v1084 = vmul.f32 %v1020, %v1020
        %v1085 = vmul.f32 %v1021, %v1021
        %v1086 = vmul.f32 %v1022, %v1022
        %v1087 = vmul.f32 %v1023, %v1023
        %v1088 = vmul.f32 %v1024, %v1024
        %v1089 = vmul.f32 %v1025, %v1025
        %v1090 = vmul.f32 %v1026, %v1026
        %v1091 = vmul.f32 %v1027, %v1027
        %v1092 = vmul.f32 %v1028, %v1028
        %v1093 = vmul.f32 %v1029, %v1029
        %v1094 = vmul.f32 %v1030, %v1030
        %v1095 = vmul.f32 %v1031, %v1031
        %v1096 = vmul.f32 %v1032, %v1032
        %v1097 = vmul.f32 %v1033, %v1033
        %v1098 = vmul.f32 %v1034, %v1034
        %v1099 = vmul.f32 %v1035, %v1035
        %v1100 = vmul.f32 %v1036, %v1036
        %v1101 = vmul.f32 %v1037, %v1037
        %v1102 = vmul.f32 %v1038, %v1038
        %v1103 = vmul.f32 %v1039, %v1039
        %v1104 = vmul.f32 %v1040, %v1040
        %v1105 = vmul.f32 %v1041, %v1041
        %v1106 = vmul.f32 %v1042, %v1042
        %v1107 = vmul.f32 %v1043, %v1043
        %v1108 = vmul.f32 %v1044, %v1044
        %v1109 = vmul.f32 %v1045, %v1045
        %v1110 = vmul.f32 %v1046, %v1046
        %v1111 = vmul.f32 %v1047, %v1047
        %v1112 = vmul.f32 %v1048, %v1048
        %v1113 = vmul.f32 %v1049, %v1049
        %v1114 = vmul.f32 %v1050, %v1050
        %v1115 = vmul.f32 %v1051, %v1051
        %v1116 = vmul.f32 %v1052, %v1052
        %v1117 = vmul.f32 %v1053, %v1053
        %v1118 = vmul.f32 %v1054, %v1054
        %v1119 = vmul.f32 %v1055, %v1055
        %v1120 = vmul.f32 %v1056, %v1056
        %v1121 = vmul.f32 %v1057, %v1057
        %v1122 = vmul.f32 %v1058, %v1058
        %v1123 = vmul.f32 %v1059, %v1059
        %v1124 = vmul.f32 %v1060, %v1060
        %v1125 = vmul.f32 %v1061, %v1061
        %v1126 = vmul.f32 %v1062, %v1062
        %v1127 = vmul.f32 %v1063, %v1063
        %v1128 = vmul.f32 %v1064, %v1064
        %v1129 = vmul.f32 %v1065, %v1065
        %v1130 = vmul.f32 %v1066, %v1066
        %v1131 = vmul.f32 %v1067, %v1067
        %v1132 = vmul.f32 %v1068, %v1068
        %v1133 = vmul.f32 %v1069, %v1069
        %v1134 = vmul.f32 %v1070, %v1070
        %v1135 = vmul.f32 %v1071, %v1071
        %v1136 = vmul.f32 %v1072, %v1072
        %v1137 = vmul.f32 %v1073, %v1073
        %v1138 = vmul.f32 %v1074, %v1074
        %1139 = vadd.xlane.f32.xlu0 %v1075
        %v1140 = vpop.xlane.xlu0 %1139
        %1141 = vadd.xlane.f32.xlu0 %v1076
        %v1142 = vpop.xlane.xlu0 %1141
        %1143 = vadd.xlane.f32.xlu0 %v1077
        %v1144 = vpop.xlane.xlu0 %1143
        %1145 = vadd.xlane.f32.xlu0 %v1078
        %v1146 = vpop.xlane.xlu0 %1145
        %1147 = vadd.xlane.f32.xlu0 %v1079
        %v1148 = vpop.xlane.xlu0 %1147
        %1149 = vadd.xlane.f32.xlu0 %v1080
        %v1150 = vpop.xlane.xlu0 %1149
        %1151 = vadd.xlane.f32.xlu0 %v1081
        %v1152 = vpop.xlane.xlu0 %1151
        %1153 = vadd.xlane.f32.xlu0 %v1082
        %v1154 = vpop.xlane.xlu0 %1153
        %1155 = vadd.xlane.f32.xlu0 %v1083
        %v1156 = vpop.xlane.xlu0 %1155
        %1157 = vadd.xlane.f32.xlu0 %v1084
        %v1158 = vpop.xlane.xlu0 %1157
        %1159 = vadd.xlane.f32.xlu0 %v1085
        %v1160 = vpop.xlane.xlu0 %1159
        %1161 = vadd.xlane.f32.xlu0 %v1086
        %v1162 = vpop.xlane.xlu0 %1161
        %1163 = vadd.xlane.f32.xlu0 %v1087
        %v1164 = vpop.xlane.xlu0 %1163
        %1165 = vadd.xlane.f32.xlu0 %v1088
        %v1166 = vpop.xlane.xlu0 %1165
        %1167 = vadd.xlane.f32.xlu0 %v1089
        %v1168 = vpop.xlane.xlu0 %1167
        %1169 = vadd.xlane.f32.xlu0 %v1090
        %v1170 = vpop.xlane.xlu0 %1169
        %1171 = vadd.xlane.f32.xlu0 %v1091
        %v1172 = vpop.xlane.xlu0 %1171
        %1173 = vadd.xlane.f32.xlu0 %v1092
        %v1174 = vpop.xlane.xlu0 %1173
        %1175 = vadd.xlane.f32.xlu0 %v1093
        %v1176 = vpop.xlane.xlu0 %1175
        %1177 = vadd.xlane.f32.xlu0 %v1094
        %v1178 = vpop.xlane.xlu0 %1177
        %1179 = vadd.xlane.f32.xlu0 %v1095
        %v1180 = vpop.xlane.xlu0 %1179
        %1181 = vadd.xlane.f32.xlu0 %v1096
        %v1182 = vpop.xlane.xlu0 %1181
        %1183 = vadd.xlane.f32.xlu0 %v1097
        %v1184 = vpop.xlane.xlu0 %1183
        %1185 = vadd.xlane.f32.xlu0 %v1098
        %v1186 = vpop.xlane.xlu0 %1185
        %1187 = vadd.xlane.f32.xlu0 %v1099
        %v1188 = vpop.xlane.xlu0 %1187
        %1189 = vadd.xlane.f32.xlu0 %v1100
        %v1190 = vpop.xlane.xlu0 %1189
        %1191 = vadd.xlane.f32.xlu0 %v1101
        %v1192 = vpop.xlane.xlu0 %1191
        %1193 = vadd.xlane.f32.xlu0 %v1102
        %v1194 = vpop.xlane.xlu0 %1193
        %1195 = vadd.xlane.f32.xlu0 %v1103
        %v1196 = vpop.xlane.xlu0 %1195
        %1197 = vadd.xlane.f32.xlu0 %v1104
        %v1198 = vpop.xlane.xlu0 %1197
        %1199 = vadd.xlane.f32.xlu0 %v1105
        %v1200 = vpop.xlane.xlu0 %1199
        %1201 = vadd.xlane.f32.xlu0 %v1106
        %v1202 = vpop.xlane.xlu0 %1201
        %1203 = vadd.xlane.f32.xlu0 %v1107
        %v1204 = vpop.xlane.xlu0 %1203
        %1205 = vadd.xlane.f32.xlu0 %v1108
        %v1206 = vpop.xlane.xlu0 %1205
        %1207 = vadd.xlane.f32.xlu0 %v1109
        %v1208 = vpop.xlane.xlu0 %1207
        %1209 = vadd.xlane.f32.xlu0 %v1110
        %v1210 = vpop.xlane.xlu0 %1209
        %1211 = vadd.xlane.f32.xlu0 %v1111
        %v1212 = vpop.xlane.xlu0 %1211
        %1213 = vadd.xlane.f32.xlu0 %v1112
        %v1214 = vpop.xlane.xlu0 %1213
        %1215 = vadd.xlane.f32.xlu0 %v1113
        %v1216 = vpop.xlane.xlu0 %1215
        %1217 = vadd.xlane.f32.xlu0 %v1114
        %v1218 = vpop.xlane.xlu0 %1217
        %1219 = vadd.xlane.f32.xlu0 %v1115
        %v1220 = vpop.xlane.xlu0 %1219
        %1221 = vadd.xlane.f32.xlu0 %v1116
        %v1222 = vpop.xlane.xlu0 %1221
        %1223 = vadd.xlane.f32.xlu0 %v1117
        %v1224 = vpop.xlane.xlu0 %1223
        %1225 = vadd.xlane.f32.xlu0 %v1118
        %v1226 = vpop.xlane.xlu0 %1225
        %1227 = vadd.xlane.f32.xlu0 %v1119
        %v1228 = vpop.xlane.xlu0 %1227
        %1229 = vadd.xlane.f32.xlu0 %v1120
        %v1230 = vpop.xlane.xlu0 %1229
        %1231 = vadd.xlane.f32.xlu0 %v1121
        %v1232 = vpop.xlane.xlu0 %1231
        %1233 = vadd.xlane.f32.xlu0 %v1122
        %v1234 = vpop.xlane.xlu0 %1233
        %1235 = vadd.xlane.f32.xlu0 %v1123
        %v1236 = vpop.xlane.xlu0 %1235
        %1237 = vadd.xlane.f32.xlu0 %v1124
        %v1238 = vpop.xlane.xlu0 %1237
        %1239 = vadd.xlane.f32.xlu0 %v1125
        %v1240 = vpop.xlane.xlu0 %1239
        %1241 = vadd.xlane.f32.xlu0 %v1126
        %v1242 = vpop.xlane.xlu0 %1241
        %1243 = vadd.xlane.f32.xlu0 %v1127
        %v1244 = vpop.xlane.xlu0 %1243
        %1245 = vadd.xlane.f32.xlu0 %v1128
        %v1246 = vpop.xlane.xlu0 %1245
        %1247 = vadd.xlane.f32.xlu0 %v1129
        %v1248 = vpop.xlane.xlu0 %1247
        %1249 = vadd.xlane.f32.xlu0 %v1130
        %v1250 = vpop.xlane.xlu0 %1249
        %1251 = vadd.xlane.f32.xlu0 %v1131
        %v1252 = vpop.xlane.xlu0 %1251
        %1253 = vadd.xlane.f32.xlu0 %v1132
        %v1254 = vpop.xlane.xlu0 %1253
        %1255 = vadd.xlane.f32.xlu0 %v1133
        %v1256 = vpop.xlane.xlu0 %1255
        %1257 = vadd.xlane.f32.xlu0 %v1134
        %v1258 = vpop.xlane.xlu0 %1257
        %1259 = vadd.xlane.f32.xlu0 %v1135
        %v1260 = vpop.xlane.xlu0 %1259
        %1261 = vadd.xlane.f32.xlu0 %v1136
        %v1262 = vpop.xlane.xlu0 %1261
        %1263 = vadd.xlane.f32.xlu0 %v1137
        %v1264 = vpop.xlane.xlu0 %1263
        %1265 = vadd.xlane.f32.xlu0 %v1138
        %v1266 = vpop.xlane.xlu0 %1265
        %v1267 = vmul.f32 %v1140, %v946
        %v1268 = vmul.f32 %v1142, %v946
        %v1269 = vmul.f32 %v1144, %v946
        %v1270 = vmul.f32 %v1146, %v946
        %v1271 = vmul.f32 %v1148, %v946
        %v1272 = vmul.f32 %v1150, %v946
        %v1273 = vmul.f32 %v1152, %v946
        %v1274 = vmul.f32 %v1154, %v946
        %v1275 = vmul.f32 %v1156, %v946
        %v1276 = vmul.f32 %v1158, %v946
        %v1277 = vmul.f32 %v1160, %v946
        %v1278 = vmul.f32 %v1162, %v946
        %v1279 = vmul.f32 %v1164, %v946
        %v1280 = vmul.f32 %v1166, %v946
        %v1281 = vmul.f32 %v1168, %v946
        %v1282 = vmul.f32 %v1170, %v946
        %v1283 = vmul.f32 %v1172, %v946
        %v1284 = vmul.f32 %v1174, %v946
        %v1285 = vmul.f32 %v1176, %v946
        %v1286 = vmul.f32 %v1178, %v946
        %v1287 = vmul.f32 %v1180, %v946
        %v1288 = vmul.f32 %v1182, %v946
        %v1289 = vmul.f32 %v1184, %v946
        %v1290 = vmul.f32 %v1186, %v946
        %v1291 = vmul.f32 %v1188, %v946
        %v1292 = vmul.f32 %v1190, %v946
        %v1293 = vmul.f32 %v1192, %v946
        %v1294 = vmul.f32 %v1194, %v946
        %v1295 = vmul.f32 %v1196, %v946
        %v1296 = vmul.f32 %v1198, %v946
        %v1297 = vmul.f32 %v1200, %v946
        %v1298 = vmul.f32 %v1202, %v946
        %v1299 = vmul.f32 %v1204, %v946
        %v1300 = vmul.f32 %v1206, %v946
        %v1301 = vmul.f32 %v1208, %v946
        %v1302 = vmul.f32 %v1210, %v946
        %v1303 = vmul.f32 %v1212, %v946
        %v1304 = vmul.f32 %v1214, %v946
        %v1305 = vmul.f32 %v1216, %v946
        %v1306 = vmul.f32 %v1218, %v946
        %v1307 = vmul.f32 %v1220, %v946
        %v1308 = vmul.f32 %v1222, %v946
        %v1309 = vmul.f32 %v1224, %v946
        %v1310 = vmul.f32 %v1226, %v946
        %v1311 = vmul.f32 %v1228, %v946
        %v1312 = vmul.f32 %v1230, %v946
        %v1313 = vmul.f32 %v1232, %v946
        %v1314 = vmul.f32 %v1234, %v946
        %v1315 = vmul.f32 %v1236, %v946
        %v1316 = vmul.f32 %v1238, %v946
        %v1317 = vmul.f32 %v1240, %v946
        %v1318 = vmul.f32 %v1242, %v946
        %v1319 = vmul.f32 %v1244, %v946
        %v1320 = vmul.f32 %v1246, %v946
        %v1321 = vmul.f32 %v1248, %v946
        %v1322 = vmul.f32 %v1250, %v946
        %v1323 = vmul.f32 %v1252, %v946
        %v1324 = vmul.f32 %v1254, %v946
        %v1325 = vmul.f32 %v1256, %v946
        %v1326 = vmul.f32 %v1258, %v946
        %v1327 = vmul.f32 %v1260, %v946
        %v1328 = vmul.f32 %v1262, %v946
        %v1329 = vmul.f32 %v1264, %v946
        %v1330 = vmul.f32 %v1266, %v946
        %v1331 = vadd.f32 %v1267, 1e-05
        %v1332 = vadd.f32 %v1268, 1e-05
        %v1333 = vadd.f32 %v1269, 1e-05
        %v1334 = vadd.f32 %v1270, 1e-05
        %v1335 = vadd.f32 %v1271, 1e-05
        %v1336 = vadd.f32 %v1272, 1e-05
        %v1337 = vadd.f32 %v1273, 1e-05
        %v1338 = vadd.f32 %v1274, 1e-05
        %v1339 = vadd.f32 %v1275, 1e-05
        %v1340 = vadd.f32 %v1276, 1e-05
        %v1341 = vadd.f32 %v1277, 1e-05
        %v1342 = vadd.f32 %v1278, 1e-05
        %v1343 = vadd.f32 %v1279, 1e-05
        %v1344 = vadd.f32 %v1280, 1e-05
        %v1345 = vadd.f32 %v1281, 1e-05
        %v1346 = vadd.f32 %v1282, 1e-05
        %v1347 = vadd.f32 %v1283, 1e-05
        %v1348 = vadd.f32 %v1284, 1e-05
        %v1349 = vadd.f32 %v1285, 1e-05
        %v1350 = vadd.f32 %v1286, 1e-05
        %v1351 = vadd.f32 %v1287, 1e-05
        %v1352 = vadd.f32 %v1288, 1e-05
        %v1353 = vadd.f32 %v1289, 1e-05
        %v1354 = vadd.f32 %v1290, 1e-05
        %v1355 = vadd.f32 %v1291, 1e-05
        %v1356 = vadd.f32 %v1292, 1e-05
        %v1357 = vadd.f32 %v1293, 1e-05
        %v1358 = vadd.f32 %v1294, 1e-05
        %v1359 = vadd.f32 %v1295, 1e-05
        %v1360 = vadd.f32 %v1296, 1e-05
        %v1361 = vadd.f32 %v1297, 1e-05
        %v1362 = vadd.f32 %v1298, 1e-05
        %v1363 = vadd.f32 %v1299, 1e-05
        %v1364 = vadd.f32 %v1300, 1e-05
        %v1365 = vadd.f32 %v1301, 1e-05
        %v1366 = vadd.f32 %v1302, 1e-05
        %v1367 = vadd.f32 %v1303, 1e-05
        %v1368 = vadd.f32 %v1304, 1e-05
        %v1369 = vadd.f32 %v1305, 1e-05
        %v1370 = vadd.f32 %v1306, 1e-05
        %v1371 = vadd.f32 %v1307, 1e-05
        %v1372 = vadd.f32 %v1308, 1e-05
        %v1373 = vadd.f32 %v1309, 1e-05
        %v1374 = vadd.f32 %v1310, 1e-05
        %v1375 = vadd.f32 %v1311, 1e-05
        %v1376 = vadd.f32 %v1312, 1e-05
        %v1377 = vadd.f32 %v1313, 1e-05
        %v1378 = vadd.f32 %v1314, 1e-05
        %v1379 = vadd.f32 %v1315, 1e-05
        %v1380 = vadd.f32 %v1316, 1e-05
        %v1381 = vadd.f32 %v1317, 1e-05
        %v1382 = vadd.f32 %v1318, 1e-05
        %v1383 = vadd.f32 %v1319, 1e-05
        %v1384 = vadd.f32 %v1320, 1e-05
        %v1385 = vadd.f32 %v1321, 1e-05
        %v1386 = vadd.f32 %v1322, 1e-05
        %v1387 = vadd.f32 %v1323, 1e-05
        %v1388 = vadd.f32 %v1324, 1e-05
        %v1389 = vadd.f32 %v1325, 1e-05
        %v1390 = vadd.f32 %v1326, 1e-05
        %v1391 = vadd.f32 %v1327, 1e-05
        %v1392 = vadd.f32 %v1328, 1e-05
        %v1393 = vadd.f32 %v1329, 1e-05
        %v1394 = vadd.f32 %v1330, 1e-05
        %v1395 = vrsqrt.pop %v1331
        %v1396 = vrsqrt.pop %v1332
        %v1397 = vrsqrt.pop %v1333
        %v1398 = vrsqrt.pop %v1334
        %v1399 = vrsqrt.pop %v1335
        %v1400 = vrsqrt.pop %v1336
        %v1401 = vrsqrt.pop %v1337
        %v1402 = vrsqrt.pop %v1338
        %v1403 = vrsqrt.pop %v1339
        %v1404 = vrsqrt.pop %v1340
        %v1405 = vrsqrt.pop %v1341
        %v1406 = vrsqrt.pop %v1342
        %v1407 = vrsqrt.pop %v1343
        %v1408 = vrsqrt.pop %v1344
        %v1409 = vrsqrt.pop %v1345
        %v1410 = vrsqrt.pop %v1346
        %v1411 = vrsqrt.pop %v1347
        %v1412 = vrsqrt.pop %v1348
        %v1413 = vrsqrt.pop %v1349
        %v1414 = vrsqrt.pop %v1350
        %v1415 = vrsqrt.pop %v1351
        %v1416 = vrsqrt.pop %v1352
        %v1417 = vrsqrt.pop %v1353
        %v1418 = vrsqrt.pop %v1354
        %v1419 = vrsqrt.pop %v1355
        %v1420 = vrsqrt.pop %v1356
        %v1421 = vrsqrt.pop %v1357
        %v1422 = vrsqrt.pop %v1358
        %v1423 = vrsqrt.pop %v1359
        %v1424 = vrsqrt.pop %v1360
        %v1425 = vrsqrt.pop %v1361
        %v1426 = vrsqrt.pop %v1362
        %v1427 = vrsqrt.pop %v1363
        %v1428 = vrsqrt.pop %v1364
        %v1429 = vrsqrt.pop %v1365
        %v1430 = vrsqrt.pop %v1366
        %v1431 = vrsqrt.pop %v1367
        %v1432 = vrsqrt.pop %v1368
        %v1433 = vrsqrt.pop %v1369
        %v1434 = vrsqrt.pop %v1370
        %v1435 = vrsqrt.pop %v1371
        %v1436 = vrsqrt.pop %v1372
        %v1437 = vrsqrt.pop %v1373
        %v1438 = vrsqrt.pop %v1374
        %v1439 = vrsqrt.pop %v1375
        %v1440 = vrsqrt.pop %v1376
        %v1441 = vrsqrt.pop %v1377
        %v1442 = vrsqrt.pop %v1378
        %v1443 = vrsqrt.pop %v1379
        %v1444 = vrsqrt.pop %v1380
        %v1445 = vrsqrt.pop %v1381
        %v1446 = vrsqrt.pop %v1382
        %v1447 = vrsqrt.pop %v1383
        %v1448 = vrsqrt.pop %v1384
        %v1449 = vrsqrt.pop %v1385
        %v1450 = vrsqrt.pop %v1386
        %v1451 = vrsqrt.pop %v1387
        %v1452 = vrsqrt.pop %v1388
        %v1453 = vrsqrt.pop %v1389
        %v1454 = vrsqrt.pop %v1390
        %v1455 = vrsqrt.pop %v1391
        %v1456 = vrsqrt.pop %v1392
        %v1457 = vrsqrt.pop %v1393
        %v1458 = vrsqrt.pop %v1394
        %v1459 = vmul.f32 %v1011, %v1395
        %v1460 = vmul.f32 %v1012, %v1396
        %v1461 = vmul.f32 %v1013, %v1397
        %v1462 = vmul.f32 %v1014, %v1398
        %v1463 = vmul.f32 %v1015, %v1399
        %v1464 = vmul.f32 %v1016, %v1400
        %v1465 = vmul.f32 %v1017, %v1401
        %v1466 = vmul.f32 %v1018, %v1402
        %v1467 = vmul.f32 %v1019, %v1403
        %v1468 = vmul.f32 %v1020, %v1404
        %v1469 = vmul.f32 %v1021, %v1405
        %v1470 = vmul.f32 %v1022, %v1406
        %v1471 = vmul.f32 %v1023, %v1407
        %v1472 = vmul.f32 %v1024, %v1408
        %v1473 = vmul.f32 %v1025, %v1409
        %v1474 = vmul.f32 %v1026, %v1410
        %v1475 = vmul.f32 %v1027, %v1411
        %v1476 = vmul.f32 %v1028, %v1412
        %v1477 = vmul.f32 %v1029, %v1413
        %v1478 = vmul.f32 %v1030, %v1414
        %v1479 = vmul.f32 %v1031, %v1415
        %v1480 = vmul.f32 %v1032, %v1416
        %v1481 = vmul.f32 %v1033, %v1417
        %v1482 = vmul.f32 %v1034, %v1418
        %v1483 = vmul.f32 %v1035, %v1419
        %v1484 = vmul.f32 %v1036, %v1420
        %v1485 = vmul.f32 %v1037, %v1421
        %v1486 = vmul.f32 %v1038, %v1422
        %v1487 = vmul.f32 %v1039, %v1423
        %v1488 = vmul.f32 %v1040, %v1424
        %v1489 = vmul.f32 %v1041, %v1425
        %v1490 = vmul.f32 %v1042, %v1426
        %v1491 = vmul.f32 %v1043, %v1427
        %v1492 = vmul.f32 %v1044, %v1428
        %v1493 = vmul.f32 %v1045, %v1429
        %v1494 = vmul.f32 %v1046, %v1430
        %v1495 = vmul.f32 %v1047, %v1431
        %v1496 = vmul.f32 %v1048, %v1432
        %v1497 = vmul.f32 %v1049, %v1433
        %v1498 = vmul.f32 %v1050, %v1434
        %v1499 = vmul.f32 %v1051, %v1435
        %v1500 = vmul.f32 %v1052, %v1436
        %v1501 = vmul.f32 %v1053, %v1437
        %v1502 = vmul.f32 %v1054, %v1438
        %v1503 = vmul.f32 %v1055, %v1439
        %v1504 = vmul.f32 %v1056, %v1440
        %v1505 = vmul.f32 %v1057, %v1441
        %v1506 = vmul.f32 %v1058, %v1442
        %v1507 = vmul.f32 %v1059, %v1443
        %v1508 = vmul.f32 %v1060, %v1444
        %v1509 = vmul.f32 %v1061, %v1445
        %v1510 = vmul.f32 %v1062, %v1446
        %v1511 = vmul.f32 %v1063, %v1447
        %v1512 = vmul.f32 %v1064, %v1448
        %v1513 = vmul.f32 %v1065, %v1449
        %v1514 = vmul.f32 %v1066, %v1450
        %v1515 = vmul.f32 %v1067, %v1451
        %v1516 = vmul.f32 %v1068, %v1452
        %v1517 = vmul.f32 %v1069, %v1453
        %v1518 = vmul.f32 %v1070, %v1454
        %v1519 = vmul.f32 %v1071, %v1455
        %v1520 = vmul.f32 %v1072, %v1456
        %v1521 = vmul.f32 %v1073, %v1457
        %v1522 = vmul.f32 %v1074, %v1458
        %v1523 = vld [vmem:[#allocation8] sm:$0x1]
        %v1525 = vlaneseq
        %v1526 = vshrl.u32 %v1525, 7
        %v1527 = vsub.s32 0, %v1526
        %v1528 = vrot.slane %v1523, %v1527
        %v1530 = vmul.f32 %v1459, %v1528
        %v1531 = vmul.f32 %v1460, %v1528
        %v1532 = vmul.f32 %v1461, %v1528
        %v1533 = vmul.f32 %v1462, %v1528
        %v1534 = vmul.f32 %v1463, %v1528
        %v1535 = vmul.f32 %v1464, %v1528
        %v1536 = vmul.f32 %v1465, %v1528
        %v1537 = vmul.f32 %v1466, %v1528
        %v1538 = vmul.f32 %v1467, %v1528
        %v1539 = vmul.f32 %v1468, %v1528
        %v1540 = vmul.f32 %v1469, %v1528
        %v1541 = vmul.f32 %v1470, %v1528
        %v1542 = vmul.f32 %v1471, %v1528
        %v1543 = vmul.f32 %v1472, %v1528
        %v1544 = vmul.f32 %v1473, %v1528
        %v1545 = vmul.f32 %v1474, %v1528
        %v1546 = vmul.f32 %v1475, %v1528
        %v1547 = vmul.f32 %v1476, %v1528
        %v1548 = vmul.f32 %v1477, %v1528
        %v1549 = vmul.f32 %v1478, %v1528
        %v1550 = vmul.f32 %v1479, %v1528
        %v1551 = vmul.f32 %v1480, %v1528
        %v1552 = vmul.f32 %v1481, %v1528
        %v1553 = vmul.f32 %v1482, %v1528
        %v1554 = vmul.f32 %v1483, %v1528
        %v1555 = vmul.f32 %v1484, %v1528
        %v1556 = vmul.f32 %v1485, %v1528
        %v1557 = vmul.f32 %v1486, %v1528
        %v1558 = vmul.f32 %v1487, %v1528
        %v1559 = vmul.f32 %v1488, %v1528
        %v1560 = vmul.f32 %v1489, %v1528
        %v1561 = vmul.f32 %v1490, %v1528
        %v1562 = vmul.f32 %v1491, %v1528
        %v1563 = vmul.f32 %v1492, %v1528
        %v1564 = vmul.f32 %v1493, %v1528
        %v1565 = vmul.f32 %v1494, %v1528
        %v1566 = vmul.f32 %v1495, %v1528
        %v1567 = vmul.f32 %v1496, %v1528
        %v1568 = vmul.f32 %v1497, %v1528
        %v1569 = vmul.f32 %v1498, %v1528
        %v1570 = vmul.f32 %v1499, %v1528
        %v1571 = vmul.f32 %v1500, %v1528
        %v1572 = vmul.f32 %v1501, %v1528
        %v1573 = vmul.f32 %v1502, %v1528
        %v1574 = vmul.f32 %v1503, %v1528
        %v1575 = vmul.f32 %v1504, %v1528
        %v1576 = vmul.f32 %v1505, %v1528
        %v1577 = vmul.f32 %v1506, %v1528
        %v1578 = vmul.f32 %v1507, %v1528
        %v1579 = vmul.f32 %v1508, %v1528
        %v1580 = vmul.f32 %v1509, %v1528
        %v1581 = vmul.f32 %v1510, %v1528
        %v1582 = vmul.f32 %v1511, %v1528
        %v1583 = vmul.f32 %v1512, %v1528
        %v1584 = vmul.f32 %v1513, %v1528
        %v1585 = vmul.f32 %v1514, %v1528
        %v1586 = vmul.f32 %v1515, %v1528
        %v1587 = vmul.f32 %v1516, %v1528
        %v1588 = vmul.f32 %v1517, %v1528
        %v1589 = vmul.f32 %v1518, %v1528
        %v1590 = vmul.f32 %v1519, %v1528
        %v1591 = vmul.f32 %v1520, %v1528
        %v1592 = vmul.f32 %v1521, %v1528
        %v1593 = vmul.f32 %v1522, %v1528
        %v1594 = vld [vmem:[#allocation10] sm:$0x1]
        %v1596 = vlaneseq
        %v1597 = vshrl.u32 %v1596, 7
        %v1598 = vsub.s32 0, %v1597
        %v1599 = vrot.slane %v1594, %v1598
        %v1601 = vadd.f32 %v1530, %v1599
        %v1602 = vadd.f32 %v1531, %v1599
        %v1603 = vadd.f32 %v1532, %v1599
        %v1604 = vadd.f32 %v1533, %v1599
        %v1605 = vadd.f32 %v1534, %v1599
        %v1606 = vadd.f32 %v1535, %v1599
        %v1607 = vadd.f32 %v1536, %v1599
        %v1608 = vadd.f32 %v1537, %v1599
        %v1609 = vadd.f32 %v1538, %v1599
        %v1610 = vadd.f32 %v1539, %v1599
        %v1611 = vadd.f32 %v1540, %v1599
        %v1612 = vadd.f32 %v1541, %v1599
        %v1613 = vadd.f32 %v1542, %v1599
        %v1614 = vadd.f32 %v1543, %v1599
        %v1615 = vadd.f32 %v1544, %v1599
        %v1616 = vadd.f32 %v1545, %v1599
        %v1617 = vadd.f32 %v1546, %v1599
        %v1618 = vadd.f32 %v1547, %v1599
        %v1619 = vadd.f32 %v1548, %v1599
        %v1620 = vadd.f32 %v1549, %v1599
        %v1621 = vadd.f32 %v1550, %v1599
        %v1622 = vadd.f32 %v1551, %v1599
        %v1623 = vadd.f32 %v1552, %v1599
        %v1624 = vadd.f32 %v1553, %v1599
        %v1625 = vadd.f32 %v1554, %v1599
        %v1626 = vadd.f32 %v1555, %v1599
        %v1627 = vadd.f32 %v1556, %v1599
        %v1628 = vadd.f32 %v1557, %v1599
        %v1629 = vadd.f32 %v1558, %v1599
        %v1630 = vadd.f32 %v1559, %v1599
        %v1631 = vadd.f32 %v1560, %v1599
        %v1632 = vadd.f32 %v1561, %v1599
        %v1633 = vadd.f32 %v1562, %v1599
        %v1634 = vadd.f32 %v1563, %v1599
        %v1635 = vadd.f32 %v1564, %v1599
        %v1636 = vadd.f32 %v1565, %v1599
        %v1637 = vadd.f32 %v1566, %v1599
        %v1638 = vadd.f32 %v1567, %v1599
        %v1639 = vadd.f32 %v1568, %v1599
        %v1640 = vadd.f32 %v1569, %v1599
        %v1641 = vadd.f32 %v1570, %v1599
        %v1642 = vadd.f32 %v1571, %v1599
        %v1643 = vadd.f32 %v1572, %v1599
        %v1644 = vadd.f32 %v1573, %v1599
        %v1645 = vadd.f32 %v1574, %v1599
        %v1646 = vadd.f32 %v1575, %v1599
        %v1647 = vadd.f32 %v1576, %v1599
        %v1648 = vadd.f32 %v1577, %v1599
        %v1649 = vadd.f32 %v1578, %v1599
        %v1650 = vadd.f32 %v1579, %v1599
        %v1651 = vadd.f32 %v1580, %v1599
        %v1652 = vadd.f32 %v1581, %v1599
        %v1653 = vadd.f32 %v1582, %v1599
        %v1654 = vadd.f32 %v1583, %v1599
        %v1655 = vadd.f32 %v1584, %v1599
        %v1656 = vadd.f32 %v1585, %v1599
        %v1657 = vadd.f32 %v1586, %v1599
        %v1658 = vadd.f32 %v1587, %v1599
        %v1659 = vadd.f32 %v1588, %v1599
        %v1660 = vadd.f32 %v1589, %v1599
        %v1661 = vadd.f32 %v1590, %v1599
        %v1662 = vadd.f32 %v1591, %v1599
        %v1663 = vadd.f32 %v1592, %v1599
        %v1664 = vadd.f32 %v1593, %v1599
        %1665 = vst [vmem:[%s294] sm:$0xff] %v1601
        %1666 = vst [vmem:[%s294 + $0x8] sm:$0xff] %v1602
        %1667 = vst [vmem:[%s294 + $0x10] sm:$0xff] %v1603
        %1668 = vst [vmem:[%s294 + $0x18] sm:$0xff] %v1604
        %1669 = vst [vmem:[%s294 + $0x20] sm:$0xff] %v1605
        %1670 = vst [vmem:[%s294 + $0x28] sm:$0xff] %v1606
        %1671 = vst [vmem:[%s294 + $0x30] sm:$0xff] %v1607
        %1672 = vst [vmem:[%s294 + $0x38] sm:$0xff] %v1608
        %1673 = vst [vmem:[%s294 + $0x40] sm:$0xff] %v1609
        %1674 = vst [vmem:[%s294 + $0x48] sm:$0xff] %v1610
        %1675 = vst [vmem:[%s294 + $0x50] sm:$0xff] %v1611
        %1676 = vst [vmem:[%s294 + $0x58] sm:$0xff] %v1612
        %1677 = vst [vmem:[%s294 + $0x60] sm:$0xff] %v1613
        %1678 = vst [vmem:[%s294 + $0x68] sm:$0xff] %v1614
        %1679 = vst [vmem:[%s294 + $0x70] sm:$0xff] %v1615
        %1680 = vst [vmem:[%s294 + $0x78] sm:$0xff] %v1616
        %1681 = vst [vmem:[%s294 + $0x80] sm:$0xff] %v1617
        %1682 = vst [vmem:[%s294 + $0x88] sm:$0xff] %v1618
        %1683 = vst [vmem:[%s294 + $0x90] sm:$0xff] %v1619
        %1684 = vst [vmem:[%s294 + $0x98] sm:$0xff] %v1620
        %1685 = vst [vmem:[%s294 + $0xa0] sm:$0xff] %v1621
        %1686 = vst [vmem:[%s294 + $0xa8] sm:$0xff] %v1622
        %1687 = vst [vmem:[%s294 + $0xb0] sm:$0xff] %v1623
        %1688 = vst [vmem:[%s294 + $0xb8] sm:$0xff] %v1624
        %1689 = vst [vmem:[%s294 + $0xc0] sm:$0xff] %v1625
        %1690 = vst [vmem:[%s294 + $0xc8] sm:$0xff] %v1626
        %1691 = vst [vmem:[%s294 + $0xd0] sm:$0xff] %v1627
        %1692 = vst [vmem:[%s294 + $0xd8] sm:$0xff] %v1628
        %1693 = vst [vmem:[%s294 + $0xe0] sm:$0xff] %v1629
        %1694 = vst [vmem:[%s294 + $0xe8] sm:$0xff] %v1630
        %1695 = vst [vmem:[%s294 + $0xf0] sm:$0xff] %v1631
        %1696 = vst [vmem:[%s294 + $0xf8] sm:$0xff] %v1632
        %1697 = vst [vmem:[%s294 + $0x100] sm:$0xff] %v1633
        %1698 = vst [vmem:[%s294 + $0x108] sm:$0xff] %v1634
        %1699 = vst [vmem:[%s294 + $0x110] sm:$0xff] %v1635
        %1700 = vst [vmem:[%s294 + $0x118] sm:$0xff] %v1636
        %1701 = vst [vmem:[%s294 + $0x120] sm:$0xff] %v1637
        %1702 = vst [vmem:[%s294 + $0x128] sm:$0xff] %v1638
        %1703 = vst [vmem:[%s294 + $0x130] sm:$0xff] %v1639
        %1704 = vst [vmem:[%s294 + $0x138] sm:$0xff] %v1640
        %1705 = vst [vmem:[%s294 + $0x140] sm:$0xff] %v1641
        %1706 = vst [vmem:[%s294 + $0x148] sm:$0xff] %v1642
        %1707 = vst [vmem:[%s294 + $0x150] sm:$0xff] %v1643
        %1708 = vst [vmem:[%s294 + $0x158] sm:$0xff] %v1644
        %1709 = vst [vmem:[%s294 + $0x160] sm:$0xff] %v1645
        %1710 = vst [vmem:[%s294 + $0x168] sm:$0xff] %v1646
        %1711 = vst [vmem:[%s294 + $0x170] sm:$0xff] %v1647
        %1712 = vst [vmem:[%s294 + $0x178] sm:$0xff] %v1648
        %1713 = vst [vmem:[%s294 + $0x180] sm:$0xff] %v1649
        %1714 = vst [vmem:[%s294 + $0x188] sm:$0xff] %v1650
        %1715 = vst [vmem:[%s294 + $0x190] sm:$0xff] %v1651
        %1716 = vst [vmem:[%s294 + $0x198] sm:$0xff] %v1652
        %1717 = vst [vmem:[%s294 + $0x1a0] sm:$0xff] %v1653
        %1718 = vst [vmem:[%s294 + $0x1a8] sm:$0xff] %v1654
        %1719 = vst [vmem:[%s294 + $0x1b0] sm:$0xff] %v1655
        %1720 = vst [vmem:[%s294 + $0x1b8] sm:$0xff] %v1656
        %1721 = vst [vmem:[%s294 + $0x1c0] sm:$0xff] %v1657
        %1722 = vst [vmem:[%s294 + $0x1c8] sm:$0xff] %v1658
        %1723 = vst [vmem:[%s294 + $0x1d0] sm:$0xff] %v1659
        %1724 = vst [vmem:[%s294 + $0x1d8] sm:$0xff] %v1660
        %1725 = vst [vmem:[%s294 + $0x1e0] sm:$0xff] %v1661
        %1726 = vst [vmem:[%s294 + $0x1e8] sm:$0xff] %v1662
        %1727 = vst [vmem:[%s294 + $0x1f0] sm:$0xff] %v1663
        %1728 = vst [vmem:[%s294 + $0x1f8] sm:$0xff] %v1664
        %s1729 = sand.u32 %s142, 1
        %s1730 = scalar_lea.sflag [#allocation4], %s1729
        %s1731 = sand.u32 %s142, 1
        %s1732 = smul.addr %s1731, 512
        %s1733 = scalar_lea.vmem [#allocation11], %s1732
        // Predicated region
        $region61: #{_residual_impl.1} parent=39 // pred_check
          %p1734 = pneg %p152
        $region62: #{_residual_impl.1} parent=39 // pred_check_branch
          %1736 = sbr.rel (%p1734) target = $region64
        $region63: #{_residual_impl.1} parent=39 // pred_region
          %s1737 = smul.u32 64, %s24
          %s1739 = ssub.s32 8192, 8192
          %1740 = vsyncadd %s1730, %s1739
          %s1741 = smul.addr %s1737, 128
          %s1742 = scalar_lea.hbm %s5, %s1741
          %s1743 = sshll.u32 %s1733, 4
          %s1744 = int_to_ptr.vmem [resolvable:$true] %s1743
          %1749 = dma.vmem_to_hbm [thread:$0]  %s1744, 8192, %s1742, %s1730, 128, 128, 8
        $region64: #{_residual_impl.1} parent=39 // pred_fallthru
          _
      $region40: #{_residual_impl.1} parent=5 // pred_fallthru
        _
      %p1750 = scmp.le.s32.totalorder 2, %s19
      // Predicated region
      $region65: #{_residual_impl.1} parent=5 // pred_check
        %p1751 = pneg %p1750
      $region66: #{_residual_impl.1} parent=5 // pred_check_branch
        %1753 = sbr.rel (%p1751) target = $region68
      $region67: #{_residual_impl.1} parent=5 // pred_region
        %s1754 = ssub.s32 %s19, 2
        // Predicated region
        $region69: #{_residual_impl.1} parent=67 // pred_check
          %p1755 = pneg %p158
        $region70: #{_residual_impl.1} parent=67 // pred_check_branch
          %1757 = sbr.rel (%p1755) target = $region72
        $region71: #{_residual_impl.1} parent=67 // pred_region
          %s1758 = sand.u32 %s143, 1
          %s1759 = scalar_lea.sflag [#allocation4], %s1758
          %s1760 = sand.u32 %s143, 1
          %s1761 = smul.addr %s1760, 512
          %s1762 = scalar_lea.vmem [#allocation11], %s1761
          %1763 = dma.done %s1759, 8192
        $region72: #{_residual_impl.1} parent=67 // pred_fallthru
          _
      $region68: #{_residual_impl.1} parent=5 // pred_fallthru
        _
    $region6: #{_residual_impl.1} parent=1 // loop_footer
      %s23 = sadd.s32 1, %s19
    $region7: #{_residual_impl.1} parent=1 // loop_footer_branch
      %18 = sbr.rel target = $region3
    $region8: #{_residual_impl.1} parent=1 // loop_exit
      _
    %1764 = vsyncpa [#allocation3], 1
    %s1765 = scalar_lea.sflag [#allocation3], 1
    %1766 = vsyncpa %s1765, 1
    %1767 = vsyncpa [#allocation6], 1
    %1768 = vsyncpa [#allocation9], 1
    %1769 = vsyncpa [#allocation4], 1
    %s1770 = scalar_lea.sflag [#allocation4], 1
    %1771 = vsyncpa %s1770, 1

</llo_original>
